<compile_context>
chip_gen: v7x
topology: tpu7x:2x2x1
jax: 0.10.0
libtpu: 0.0.40
codegen_flags: <defaults>
</compile_context>

<pallas_src>
import math

import jax
import jax.numpy as jnp
from jax.experimental import pallas as pl
from jax.experimental.pallas import tpu as pltpu


# ----------------------------------------------------------------------------
# Fused Pallas kernel: all layers for ONE batch element per grid step.
# ----------------------------------------------------------------------------
def pitch_predictor_kernel(
    x_ref, mask_ref, gb_ref,
    w_att_ref, b_att_ref, wo_ref, bo_ref, w1_ref, b1_ref, w2_ref, b2_ref,
    out_ref, attn_ref,
):
    T, H = x_ref.shape
    L = w_att_ref.shape[0]
    n_heads = w_att_ref.shape[1]
    dh = w_att_ref.shape[3] // 3
    eps = 1e-5

    x = x_ref[...].astype(jnp.float32)                 # (T, H) f32 master activation
    mask_row = mask_ref[...].astype(jnp.float32)       # (1, T)  1 = valid, 0 = padded
    key_bias = (mask_row - 1.0) * 1e9                  # (1, T)  0 / -1e9, built in-kernel
    mask_col = jnp.transpose(mask_row)                 # (T, 1)  residual-row mask

    def layer_norm(v, gamma, beta):
        mu = jnp.mean(v, axis=-1, keepdims=True)
        var = jnp.mean((v - mu) ** 2, axis=-1, keepdims=True)
        return gamma * (v - mu) * jax.lax.rsqrt(var + eps) + beta

    # Tiny static layer count -> unrolled; weights stay resident in VMEM.
    for l in range(L):
        gbl = gb_ref[l].astype(jnp.float32).reshape(1, 4 * H)   # (1, 4H) = [g1|b1|g2|b2]
        xb = x.astype(jnp.bfloat16)                             # single cast per layer

        # ---- MHSA: per-head weight blocks on a leading axis (no activation relayout);
        #      head outputs land in the (T, H) VMEM scratch; ONE W_o matmul afterwards.
        for h in range(n_heads):
            qkv_h = (jnp.dot(xb, w_att_ref[l, h],
                             preferred_element_type=jnp.float32)
                     + b_att_ref[l, h]).astype(jnp.bfloat16)    # (T, 3*dh), one cast
            q_h = qkv_h[:, 0 * dh:1 * dh]
            k_h = qkv_h[:, 1 * dh:2 * dh]
            v_h = qkv_h[:, 2 * dh:3 * dh]

            # q @ k^T via dot_general (contract last dims); 1/sqrt(dh) already folded
            # into the Q weights at pack time.
            s = jax.lax.dot_general(q_h, k_h, (((1,), (1,)), ((), ())),
                                    preferred_element_type=jnp.float32)   # (T, T)
            s = s + key_bias                                    # mask padded keys
            s = s - jnp.max(s, axis=-1, keepdims=True)
            p = jnp.exp(s)
            p = p * pl.reciprocal(jnp.sum(p, axis=-1, keepdims=True), approx=True)

            o_h = jnp.dot(p.astype(jnp.bfloat16), v_h,
                          preferred_element_type=jnp.float32)   # (T, dh)
            attn_ref[:, h * dh:(h + 1) * dh] = o_h              # lane-slice store

        att = (jnp.dot(attn_ref[...].astype(jnp.bfloat16), wo_ref[l],
                       preferred_element_type=jnp.float32)
               + bo_ref[l])                                     # (T, H), single W_o matmul

        # ---- residual + mask + style-adaptive LayerNorm #1 (broadcast in-expression) ----
        y = (x + att) * mask_col
        y = layer_norm(y, gbl[:, 0 * H:1 * H], gbl[:, 1 * H:2 * H])

        # ---- position-wise FFN + residual + mask + SALN #2 ----
        hid = jnp.maximum(
            jnp.dot(y.astype(jnp.bfloat16), w1_ref[l],
                    preferred_element_type=jnp.float32) + b1_ref[l], 0.0)
        ffn = (jnp.dot(hid.astype(jnp.bfloat16), w2_ref[l],
                       preferred_element_type=jnp.float32) + b2_ref[l])
        z = (y + ffn) * mask_col
        x = layer_norm(z, gbl[:, 2 * H:3 * H], gbl[:, 3 * H:4 * H])

    # TODO(synk): output last dim H=32 < 128 lanes -> masked partial store; acceptable
    # at these shapes, reconsider a lane-dense output slab for production sizes.
    out_ref[...] = x.astype(out_ref.dtype)


# ----------------------------------------------------------------------------
# One-time weight packing (init time, OFF the forward hot path).
# ----------------------------------------------------------------------------
def pack_pitch_predictor_params(layer_params, n_heads):
    wdt = jnp.bfloat16
    H = layer_params[0]["wq"].shape[0]
    dh = H // n_heads
    scale = 1.0 / math.sqrt(dh)

    w_att, b_att = [], []
    for p in layer_params:
        wq = p["wq"] * scale          # fold attention scale into Q weights ...
        bq = p["bq"] * scale          # ... and Q bias
        pw, pb = [], []
        for h in range(n_heads):
            sl = slice(h * dh, (h + 1) * dh)
            pw.append(jnp.concatenate([wq[:, sl], p["wk"][:, sl], p["wv"][:, sl]], axis=1))
            pb.append(jnp.concatenate([bq[:, sl], p["bk"][:, sl], p["bv"][:, sl]], axis=1))
        w_att.append(jnp.stack(pw))   # (n_heads, H, 3*dh)
        b_att.append(jnp.stack(pb))   # (n_heads, 1, 3*dh)

    return {
        "w_att": jnp.stack(w_att).astype(wdt),                          # (L, nh, H, 3dh)
        "b_att": jnp.stack(b_att).astype(jnp.float32),                  # (L, nh, 1, 3dh)
        "wo": jnp.stack([p["wo"] for p in layer_params]).astype(wdt),   # (L, H, H)
        "bo": jnp.stack([p["bo"] for p in layer_params]).astype(jnp.float32),
        "w1": jnp.stack([p["w1"] for p in layer_params]).astype(wdt),   # (L, H, F)
        "b1": jnp.stack([p["b1"] for p in layer_params]).astype(jnp.float32),
        "w2": jnp.stack([p["w2"] for p in layer_params]).astype(wdt),   # (L, F, H)
        "b2": jnp.stack([p["b2"] for p in layer_params]).astype(jnp.float32),
        # SALN style projection, both layer norms fused: (L, S, 4H) / (L, 4H)
        "ws": jnp.stack([jnp.concatenate([p["ws1"], p["ws2"]], axis=1)
                         for p in layer_params]).astype(jnp.float32),
        "bs": jnp.stack([jnp.concatenate([p["bs1"], p["bs2"]], axis=1)[0]
                         for p in layer_params]).astype(jnp.float32),
    }


# ----------------------------------------------------------------------------
# Forward: style projection (one batched XLA matmul) + one pallas_call.
# ----------------------------------------------------------------------------
def pitch_predictor_forward(packed, x, style_embedding, x_mask):
    B, T, H = x.shape
    L = packed["w_att"].shape[0]

    # gamma/beta for both SALNs of every layer: (B, L, 4H)
    gb = jnp.einsum("bs,lsg->blg",
                    style_embedding.astype(jnp.float32), packed["ws"]) + packed["bs"][None]
    mask = x_mask.astype(jnp.float32).reshape(B, 1, T)      # key bias built in-kernel

    args = (x, mask, gb,
            packed["w_att"], packed["b_att"], packed["wo"], packed["bo"],
            packed["w1"], packed["b1"], packed["w2"], packed["b2"])

    def resident(a):  # grid-invariant full-array block -> stays resident in VMEM
        zeros = (0,) * a.ndim
        return pl.BlockSpec(a.shape, lambda b, _z=zeros: _z)

    in_specs = [
        pl.BlockSpec((None, T, H), lambda b: (b, 0, 0)),        # x        (per batch)
        pl.BlockSpec((None, 1, T), lambda b: (b, 0, 0)),        # mask     (per batch)
        pl.BlockSpec((None, L, 4 * H), lambda b: (b, 0, 0)),    # gamma/beta (per batch)
    ] + [resident(a) for a in args[3:]]                         # stacked weights

    out = pl.pallas_call(
        pitch_predictor_kernel,
        out_shape=jax.ShapeDtypeStruct((B, T, H), x.dtype),
        grid_spec=pltpu.PrefetchScalarGridSpec(
            num_scalar_prefetch=0,
            grid=(B,),                                          # parallel over batch (v7x: 2 TCs)
            in_specs=in_specs,
            out_specs=pl.BlockSpec((None, T, H), lambda b: (b, 0, 0)),
            scratch_shapes=[pltpu.VMEM((T, H), jnp.float32)],   # attention head-output slab
        ),
        compiler_params=pltpu.CompilerParams(
            dimension_semantics=("parallel",),
            vmem_limit_bytes=32 * 1024 * 1024,                  # > v5e 16 MiB default, < v7x 64 MiB
        ),
    )(*args)
    return out


# ----------------------------------------------------------------------------
# Parameter init (same layout/semantics as before).
# ----------------------------------------------------------------------------
def init_layer_params(key, hidden_dim, ffn_dim, style_dim):
    ks = jax.random.split(key, 8)
    std = 0.02
    H, Fd, S = hidden_dim, ffn_dim, style_dim
    return {
        "wq": jax.random.normal(ks[0], (H, H), jnp.float32) * std,
        "bq": jnp.zeros((1, H), jnp.float32),
        "wk": jax.random.normal(ks[1], (H, H), jnp.float32) * std,
        "bk": jnp.zeros((1, H), jnp.float32),
        "wv": jax.random.normal(ks[2], (H, H), jnp.float32) * std,
        "bv": jnp.zeros((1, H), jnp.float32),
        "wo": jax.random.normal(ks[3], (H, H), jnp.float32) * std,
        "bo": jnp.zeros((1, H), jnp.float32),
        "w1": jax.random.normal(ks[4], (H, Fd), jnp.float32) * std,
        "b1": jnp.zeros((1, Fd), jnp.float32),
        "w2": jax.random.normal(ks[5], (Fd, H), jnp.float32) * std,
        "b2": jnp.zeros((1, H), jnp.float32),
        # SALN: style -> [gamma, beta]; bias initialised so gamma~1, beta~0
        "ws1": jax.random.normal(ks[6], (S, 2 * H), jnp.float32) * std,
        "bs1": jnp.concatenate(
            [jnp.ones((1, H), jnp.float32), jnp.zeros((1, H), jnp.float32)], axis=-1),
        "ws2": jax.random.normal(ks[7], (S, 2 * H), jnp.float32) * std,
        "bs2": jnp.concatenate(
            [jnp.ones((1, H), jnp.float32), jnp.zeros((1, H), jnp.float32)], axis=-1),
    }


if __name__ == "__main__":
    # hp: hidden_dim=32, n_layers=2, n_heads=2, ffn_dim=64, style_dim=16, eval mode
    B, T = 2, 8
    HIDDEN, N_LAYERS, N_HEADS, FFN, STYLE = 32, 2, 2, 64, 16

    key = jax.random.PRNGKey(0)
    kx, ks, kp = jax.random.split(key, 3)

    x = jax.random.normal(kx, (B, T, HIDDEN), jnp.float32)
    style = jax.random.normal(ks, (B, STYLE), jnp.float32)
    # mask: first batch fully valid, second has last 3 frames padded
    x_mask = jnp.ones((B, T), jnp.float32).at[1, T - 3:].set(0.0)

    layer_keys = jax.random.split(kp, N_LAYERS)
    layer_params = [init_layer_params(k, HIDDEN, FFN, STYLE) for k in layer_keys]

    # Pack once at init (off the forward hot path), then run the fused kernel.
    packed = pack_pitch_predictor_params(layer_params, N_HEADS)
    forward = jax.jit(pitch_predictor_forward)

    out = forward(packed, x, style, x_mask)
    out = jax.block_until_ready(out)
    assert out.shape == (B, T, HIDDEN)
    assert jnp.all(jnp.isfinite(out))
    print("KERNEL_OK")
</pallas_src>

<mosaic_0001>
module attributes {stable_mosaic.version = 11 : i64} {
  func.func @pitch_predictor_kernel(%arg0: i32, %arg1: memref<1x8x32xf32, #tpu.memory_space<vmem>>, %arg2: memref<1x1x8xf32, #tpu.memory_space<vmem>>, %arg3: memref<1x2x128xf32, #tpu.memory_space<vmem>>, %arg4: memref<2x2x32x48xbf16, #tpu.memory_space<vmem>>, %arg5: memref<2x2x1x48xf32, #tpu.memory_space<vmem>>, %arg6: memref<2x32x32xbf16, #tpu.memory_space<vmem>>, %arg7: memref<2x1x32xf32, #tpu.memory_space<vmem>>, %arg8: memref<2x32x64xbf16, #tpu.memory_space<vmem>>, %arg9: memref<2x1x64xf32, #tpu.memory_space<vmem>>, %arg10: memref<2x64x32xbf16, #tpu.memory_space<vmem>>, %arg11: memref<2x1x32xf32, #tpu.memory_space<vmem>>, %arg12: memref<1x8x32xf32, #tpu.memory_space<vmem>>, %arg13: memref<8x32xf32, #tpu.memory_space<vmem>>) attributes {dimension_semantics = [#tpu.dimension_semantics<parallel>], iteration_bounds = array<i64: 2>, scalar_prefetch = 0 : i64, scratch_operands = 1 : i64, tpu.core_type = #tpu.core_type<tc>, window_params = [{transform_indices = @transform_0, window_bounds = array<i64: 1, 8, 32>}, {transform_indices = @transform_1, window_bounds = array<i64: 1, 1, 8>}, {transform_indices = @transform_2, window_bounds = array<i64: 1, 2, 128>}, {pipeline_mode = #tpu.pipeline_mode<synchronous>, transform_indices = @transform_3, window_bounds = array<i64: 2, 2, 32, 48>}, {pipeline_mode = #tpu.pipeline_mode<synchronous>, transform_indices = @transform_4, window_bounds = array<i64: 2, 2, 1, 48>}, {pipeline_mode = #tpu.pipeline_mode<synchronous>, transform_indices = @transform_5, window_bounds = array<i64: 2, 32, 32>}, {pipeline_mode = #tpu.pipeline_mode<synchronous>, transform_indices = @transform_6, window_bounds = array<i64: 2, 1, 32>}, {pipeline_mode = #tpu.pipeline_mode<synchronous>, transform_indices = @transform_7, window_bounds = array<i64: 2, 32, 64>}, {pipeline_mode = #tpu.pipeline_mode<synchronous>, transform_indices = @transform_8, window_bounds = array<i64: 2, 1, 64>}, {pipeline_mode = #tpu.pipeline_mode<synchronous>, transform_indices = @transform_9, window_bounds = array<i64: 2, 64, 32>}, {pipeline_mode = #tpu.pipeline_mode<synchronous>, transform_indices = @transform_10, window_bounds = array<i64: 2, 1, 32>}, {transform_indices = @transform_11, window_bounds = array<i64: 1, 8, 32>}]} {
    %c0 = arith.constant 0 : index
    %c0_0 = arith.constant 0 : index
    %c0_1 = arith.constant 0 : index
    %0 = vector.load %arg1[%c0, %c0_0, %c0_1] : memref<1x8x32xf32, #tpu.memory_space<vmem>>, vector<1x8x32xf32>
    %1 = vector.shape_cast %0 : vector<1x8x32xf32> to vector<8x32xf32>
    %c0_2 = arith.constant 0 : index
    %c0_3 = arith.constant 0 : index
    %c0_4 = arith.constant 0 : index
    %2 = vector.load %arg2[%c0_2, %c0_3, %c0_4] : memref<1x1x8xf32, #tpu.memory_space<vmem>>, vector<1x1x8xf32>
    %3 = vector.shape_cast %2 : vector<1x1x8xf32> to vector<1x8xf32>
    %cst = arith.constant 1.000000e+00 : f32
    %4 = vector.broadcast %cst : f32 to vector<1x8xf32>
    %5 = arith.subf %3, %4 : vector<1x8xf32>
    %cst_5 = arith.constant 1.000000e+09 : f32
    %6 = vector.broadcast %cst_5 : f32 to vector<1x8xf32>
    %7 = arith.mulf %5, %6 : vector<1x8xf32>
    %8 = tpu.transpose %3, [1, 0] : vector<1x8xf32> -> vector<8x1xf32>
    %c0_6 = arith.constant 0 : index
    %c0_7 = arith.constant 0 : index
    %c0_8 = arith.constant 0 : index
    %9 = vector.load %arg3[%c0_6, %c0_7, %c0_8] : memref<1x2x128xf32, #tpu.memory_space<vmem>>, vector<1x1x128xf32>
    %10 = vector.shape_cast %9 : vector<1x1x128xf32> to vector<128xf32>
    %11 = vector.shape_cast %10 : vector<128xf32> to vector<1x128xf32>
    %12 = arith.truncf %1 : vector<8x32xf32> to vector<8x32xbf16>
    %c0_9 = arith.constant 0 : index
    %c0_10 = arith.constant 0 : index
    %c0_11 = arith.constant 0 : index
    %c0_12 = arith.constant 0 : index
    %13 = vector.load %arg4[%c0_9, %c0_10, %c0_11, %c0_12] : memref<2x2x32x48xbf16, #tpu.memory_space<vmem>>, vector<1x1x32x48xbf16>
    %14 = vector.shape_cast %13 : vector<1x1x32x48xbf16> to vector<32x48xbf16>
    %cst_13 = arith.constant dense<0.000000e+00> : vector<8x48xf32>
    %15 = tpu.matmul %12, %14, %cst_13 {dimension_numbers = #tpu.dot_dimension_numbers<[1], [0], [0], [1], [0, 0, 1, 1], [], []>} : vector<8x32xbf16>, vector<32x48xbf16>, vector<8x48xf32> -> vector<8x48xf32>
    %c0_14 = arith.constant 0 : index
    %c0_15 = arith.constant 0 : index
    %c0_16 = arith.constant 0 : index
    %c0_17 = arith.constant 0 : index
    %16 = vector.load %arg5[%c0_14, %c0_15, %c0_16, %c0_17] : memref<2x2x1x48xf32, #tpu.memory_space<vmem>>, vector<1x1x1x48xf32>
    %17 = vector.shape_cast %16 : vector<1x1x1x48xf32> to vector<1x48xf32>
    %18 = vector.broadcast %17 : vector<1x48xf32> to vector<8x48xf32>
    %19 = arith.addf %15, %18 : vector<8x48xf32>
    %20 = arith.truncf %19 : vector<8x48xf32> to vector<8x48xbf16>
    %21 = vector.extract_strided_slice %20 {offsets = [0, 0], sizes = [8, 16], strides = [1, 1]} : vector<8x48xbf16> to vector<8x16xbf16>
    %22 = vector.extract_strided_slice %20 {offsets = [0, 16], sizes = [8, 16], strides = [1, 1]} : vector<8x48xbf16> to vector<8x16xbf16>
    %23 = vector.extract_strided_slice %20 {offsets = [0, 32], sizes = [8, 16], strides = [1, 1]} : vector<8x48xbf16> to vector<8x16xbf16>
    %cst_18 = arith.constant dense<0.000000e+00> : vector<8x8xf32>
    %24 = tpu.matmul %21, %22, %cst_18 {dimension_numbers = #tpu.dot_dimension_numbers<[1], [1], [0], [0], [0, 0, 1, 0], [], []>} : vector<8x16xbf16>, vector<8x16xbf16>, vector<8x8xf32> -> vector<8x8xf32>
    %25 = vector.broadcast %7 : vector<1x8xf32> to vector<8x8xf32>
    %26 = arith.addf %24, %25 : vector<8x8xf32>
    %cst_19 = arith.constant dense<0xFF800000> : vector<8xf32>
    %27 = vector.multi_reduction <maximumf>, %26, %cst_19 [1] : vector<8x8xf32> to vector<8xf32>
    %28 = vector.shape_cast %27 : vector<8xf32> to vector<8x1xf32>
    %29 = vector.broadcast %28 : vector<8x1xf32> to vector<8x8xf32>
    %30 = arith.subf %26, %29 : vector<8x8xf32>
    %31 = math.exp %30 : vector<8x8xf32>
    %cst_20 = arith.constant dense<0.000000e+00> : vector<8xf32>
    %32 = vector.multi_reduction <add>, %31, %cst_20 [1] : vector<8x8xf32> to vector<8xf32>
    %33 = vector.shape_cast %32 : vector<8xf32> to vector<8x1xf32>
    %34 = tpu.reciprocal %33 {approx = true} : vector<8x1xf32> -> vector<8x1xf32>
    %35 = vector.broadcast %34 : vector<8x1xf32> to vector<8x8xf32>
    %36 = arith.mulf %31, %35 : vector<8x8xf32>
    %37 = arith.truncf %36 : vector<8x8xf32> to vector<8x8xbf16>
    %cst_21 = arith.constant dense<0.000000e+00> : vector<8x16xf32>
    %38 = tpu.matmul %37, %23, %cst_21 {dimension_numbers = #tpu.dot_dimension_numbers<[1], [0], [0], [1], [0, 0, 1, 1], [], []>} : vector<8x8xbf16>, vector<8x16xbf16>, vector<8x16xf32> -> vector<8x16xf32>
    %c0_22 = arith.constant 0 : index
    %c0_23 = arith.constant 0 : index
    %39 = vector.load %arg13[%c0_22, %c0_23] : memref<8x32xf32, #tpu.memory_space<vmem>>, vector<8x16xf32>
    tpu.vector_store %arg13[%c0_22, %c0_23], %38 {strides = array<i32>} : memref<8x32xf32, #tpu.memory_space<vmem>>, vector<8x16xf32>,
    %c0_24 = arith.constant 0 : index
    %c1 = arith.constant 1 : index
    %c0_25 = arith.constant 0 : index
    %c0_26 = arith.constant 0 : index
    %40 = vector.load %arg4[%c0_24, %c1, %c0_25, %c0_26] : memref<2x2x32x48xbf16, #tpu.memory_space<vmem>>, vector<1x1x32x48xbf16>
    %41 = vector.shape_cast %40 : vector<1x1x32x48xbf16> to vector<32x48xbf16>
    %cst_27 = arith.constant dense<0.000000e+00> : vector<8x48xf32>
    %42 = tpu.matmul %12, %41, %cst_27 {dimension_numbers = #tpu.dot_dimension_numbers<[1], [0], [0], [1], [0, 0, 1, 1], [], []>} : vector<8x32xbf16>, vector<32x48xbf16>, vector<8x48xf32> -> vector<8x48xf32>
    %c0_28 = arith.constant 0 : index
    %c1_29 = arith.constant 1 : index
    %c0_30 = arith.constant 0 : index
    %c0_31 = arith.constant 0 : index
    %43 = vector.load %arg5[%c0_28, %c1_29, %c0_30, %c0_31] : memref<2x2x1x48xf32, #tpu.memory_space<vmem>>, vector<1x1x1x48xf32>
    %44 = vector.shape_cast %43 : vector<1x1x1x48xf32> to vector<1x48xf32>
    %45 = vector.broadcast %44 : vector<1x48xf32> to vector<8x48xf32>
    %46 = arith.addf %42, %45 : vector<8x48xf32>
    %47 = arith.truncf %46 : vector<8x48xf32> to vector<8x48xbf16>
    %48 = vector.extract_strided_slice %47 {offsets = [0, 0], sizes = [8, 16], strides = [1, 1]} : vector<8x48xbf16> to vector<8x16xbf16>
    %49 = vector.extract_strided_slice %47 {offsets = [0, 16], sizes = [8, 16], strides = [1, 1]} : vector<8x48xbf16> to vector<8x16xbf16>
    %50 = vector.extract_strided_slice %47 {offsets = [0, 32], sizes = [8, 16], strides = [1, 1]} : vector<8x48xbf16> to vector<8x16xbf16>
    %cst_32 = arith.constant dense<0.000000e+00> : vector<8x8xf32>
    %51 = tpu.matmul %48, %49, %cst_32 {dimension_numbers = #tpu.dot_dimension_numbers<[1], [1], [0], [0], [0, 0, 1, 0], [], []>} : vector<8x16xbf16>, vector<8x16xbf16>, vector<8x8xf32> -> vector<8x8xf32>
    %52 = vector.broadcast %7 : vector<1x8xf32> to vector<8x8xf32>
    %53 = arith.addf %51, %52 : vector<8x8xf32>
    %cst_33 = arith.constant dense<0xFF800000> : vector<8xf32>
    %54 = vector.multi_reduction <maximumf>, %53, %cst_33 [1] : vector<8x8xf32> to vector<8xf32>
    %55 = vector.shape_cast %54 : vector<8xf32> to vector<8x1xf32>
    %56 = vector.broadcast %55 : vector<8x1xf32> to vector<8x8xf32>
    %57 = arith.subf %53, %56 : vector<8x8xf32>
    %58 = math.exp %57 : vector<8x8xf32>
    %cst_34 = arith.constant dense<0.000000e+00> : vector<8xf32>
    %59 = vector.multi_reduction <add>, %58, %cst_34 [1] : vector<8x8xf32> to vector<8xf32>
    %60 = vector.shape_cast %59 : vector<8xf32> to vector<8x1xf32>
    %61 = tpu.reciprocal %60 {approx = true} : vector<8x1xf32> -> vector<8x1xf32>
    %62 = vector.broadcast %61 : vector<8x1xf32> to vector<8x8xf32>
    %63 = arith.mulf %58, %62 : vector<8x8xf32>
    %64 = arith.truncf %63 : vector<8x8xf32> to vector<8x8xbf16>
    %cst_35 = arith.constant dense<0.000000e+00> : vector<8x16xf32>
    %65 = tpu.matmul %64, %50, %cst_35 {dimension_numbers = #tpu.dot_dimension_numbers<[1], [0], [0], [1], [0, 0, 1, 1], [], []>} : vector<8x8xbf16>, vector<8x16xbf16>, vector<8x16xf32> -> vector<8x16xf32>
    %c0_36 = arith.constant 0 : index
    %c16 = arith.constant 16 : index
    %66 = vector.load %arg13[%c0_36, %c16] : memref<8x32xf32, #tpu.memory_space<vmem>>, vector<8x16xf32>
    tpu.vector_store %arg13[%c0_36, %c16], %65 {strides = array<i32>} : memref<8x32xf32, #tpu.memory_space<vmem>>, vector<8x16xf32>,
    %c0_37 = arith.constant 0 : index
    %c0_38 = arith.constant 0 : index
    %67 = vector.load %arg13[%c0_37, %c0_38] : memref<8x32xf32, #tpu.memory_space<vmem>>, vector<8x32xf32>
    %68 = arith.truncf %67 : vector<8x32xf32> to vector<8x32xbf16>
    %c0_39 = arith.constant 0 : index
    %c0_40 = arith.constant 0 : index
    %c0_41 = arith.constant 0 : index
    %69 = vector.load %arg6[%c0_39, %c0_40, %c0_41] : memref<2x32x32xbf16, #tpu.memory_space<vmem>>, vector<1x32x32xbf16>
    %70 = vector.shape_cast %69 : vector<1x32x32xbf16> to vector<32x32xbf16>
    %cst_42 = arith.constant dense<0.000000e+00> : vector<8x32xf32>
    %71 = tpu.matmul %68, %70, %cst_42 {dimension_numbers = #tpu.dot_dimension_numbers<[1], [0], [0], [1], [0, 0, 1, 1], [], []>} : vector<8x32xbf16>, vector<32x32xbf16>, vector<8x32xf32> -> vector<8x32xf32>
    %c0_43 = arith.constant 0 : index
    %c0_44 = arith.constant 0 : index
    %c0_45 = arith.constant 0 : index
    %72 = vector.load %arg7[%c0_43, %c0_44, %c0_45] : memref<2x1x32xf32, #tpu.memory_space<vmem>>, vector<1x1x32xf32>
    %73 = vector.shape_cast %72 : vector<1x1x32xf32> to vector<1x32xf32>
    %74 = vector.broadcast %73 : vector<1x32xf32> to vector<8x32xf32>
    %75 = arith.addf %71, %74 : vector<8x32xf32>
    %76 = arith.addf %1, %75 : vector<8x32xf32>
    %77 = vector.broadcast %8 : vector<8x1xf32> to vector<8x32xf32>
    %78 = arith.mulf %76, %77 : vector<8x32xf32>
    %79 = vector.extract_strided_slice %11 {offsets = [0, 0], sizes = [1, 32], strides = [1, 1]} : vector<1x128xf32> to vector<1x32xf32>
    %80 = vector.extract_strided_slice %11 {offsets = [0, 32], sizes = [1, 32], strides = [1, 1]} : vector<1x128xf32> to vector<1x32xf32>
    %cst_46 = arith.constant dense<0.000000e+00> : vector<8xf32>
    %81 = vector.multi_reduction <add>, %78, %cst_46 [1] : vector<8x32xf32> to vector<8xf32>
    %82 = vector.shape_cast %81 : vector<8xf32> to vector<8x1xf32>
    %cst_47 = arith.constant 3.200000e+01 : f32
    %83 = vector.broadcast %cst_47 : f32 to vector<8x1xf32>
    %84 = arith.divf %82, %83 : vector<8x1xf32>
    %85 = vector.broadcast %84 : vector<8x1xf32> to vector<8x32xf32>
    %86 = arith.subf %78, %85 : vector<8x32xf32>
    %87 = arith.mulf %86, %86 : vector<8x32xf32>
    %cst_48 = arith.constant dense<0.000000e+00> : vector<8xf32>
    %88 = vector.multi_reduction <add>, %87, %cst_48 [1] : vector<8x32xf32> to vector<8xf32>
    %89 = vector.shape_cast %88 : vector<8xf32> to vector<8x1xf32>
    %cst_49 = arith.constant 3.200000e+01 : f32
    %90 = vector.broadcast %cst_49 : f32 to vector<8x1xf32>
    %91 = arith.divf %89, %90 : vector<8x1xf32>
    %92 = vector.broadcast %84 : vector<8x1xf32> to vector<8x32xf32>
    %93 = arith.subf %78, %92 : vector<8x32xf32>
    %94 = vector.broadcast %79 : vector<1x32xf32> to vector<8x32xf32>
    %95 = arith.mulf %94, %93 : vector<8x32xf32>
    %cst_50 = arith.constant 9.99999974E-6 : f32
    %96 = vector.broadcast %cst_50 : f32 to vector<8x1xf32>
    %97 = arith.addf %91, %96 : vector<8x1xf32>
    %98 = math.rsqrt %97 : vector<8x1xf32>
    %99 = vector.broadcast %98 : vector<8x1xf32> to vector<8x32xf32>
    %100 = arith.mulf %95, %99 : vector<8x32xf32>
    %101 = vector.broadcast %80 : vector<1x32xf32> to vector<8x32xf32>
    %102 = arith.addf %100, %101 : vector<8x32xf32>
    %103 = arith.truncf %102 : vector<8x32xf32> to vector<8x32xbf16>
    %c0_51 = arith.constant 0 : index
    %c0_52 = arith.constant 0 : index
    %c0_53 = arith.constant 0 : index
    %104 = vector.load %arg8[%c0_51, %c0_52, %c0_53] : memref<2x32x64xbf16, #tpu.memory_space<vmem>>, vector<1x32x64xbf16>
    %105 = vector.shape_cast %104 : vector<1x32x64xbf16> to vector<32x64xbf16>
    %cst_54 = arith.constant dense<0.000000e+00> : vector<8x64xf32>
    %106 = tpu.matmul %103, %105, %cst_54 {dimension_numbers = #tpu.dot_dimension_numbers<[1], [0], [0], [1], [0, 0, 1, 1], [], []>} : vector<8x32xbf16>, vector<32x64xbf16>, vector<8x64xf32> -> vector<8x64xf32>
    %c0_55 = arith.constant 0 : index
    %c0_56 = arith.constant 0 : index
    %c0_57 = arith.constant 0 : index
    %107 = vector.load %arg9[%c0_55, %c0_56, %c0_57] : memref<2x1x64xf32, #tpu.memory_space<vmem>>, vector<1x1x64xf32>
    %108 = vector.shape_cast %107 : vector<1x1x64xf32> to vector<1x64xf32>
    %109 = vector.broadcast %108 : vector<1x64xf32> to vector<8x64xf32>
    %110 = arith.addf %106, %109 : vector<8x64xf32>
    %cst_58 = arith.constant 0.000000e+00 : f32
    %111 = vector.broadcast %cst_58 : f32 to vector<8x64xf32>
    %112 = arith.maximumf %110, %111 : vector<8x64xf32>
    %113 = arith.truncf %112 : vector<8x64xf32> to vector<8x64xbf16>
    %c0_59 = arith.constant 0 : index
    %c0_60 = arith.constant 0 : index
    %c0_61 = arith.constant 0 : index
    %114 = vector.load %arg10[%c0_59, %c0_60, %c0_61] : memref<2x64x32xbf16, #tpu.memory_space<vmem>>, vector<1x64x32xbf16>
    %115 = vector.shape_cast %114 : vector<1x64x32xbf16> to vector<64x32xbf16>
    %cst_62 = arith.constant dense<0.000000e+00> : vector<8x32xf32>
    %116 = tpu.matmul %113, %115, %cst_62 {dimension_numbers = #tpu.dot_dimension_numbers<[1], [0], [0], [1], [0, 0, 1, 1], [], []>} : vector<8x64xbf16>, vector<64x32xbf16>, vector<8x32xf32> -> vector<8x32xf32>
    %c0_63 = arith.constant 0 : index
    %c0_64 = arith.constant 0 : index
    %c0_65 = arith.constant 0 : index
    %117 = vector.load %arg11[%c0_63, %c0_64, %c0_65] : memref<2x1x32xf32, #tpu.memory_space<vmem>>, vector<1x1x32xf32>
    %118 = vector.shape_cast %117 : vector<1x1x32xf32> to vector<1x32xf32>
    %119 = vector.broadcast %118 : vector<1x32xf32> to vector<8x32xf32>
    %120 = arith.addf %116, %119 : vector<8x32xf32>
    %121 = arith.addf %102, %120 : vector<8x32xf32>
    %122 = vector.broadcast %8 : vector<8x1xf32> to vector<8x32xf32>
    %123 = arith.mulf %121, %122 : vector<8x32xf32>
    %124 = vector.extract_strided_slice %11 {offsets = [0, 64], sizes = [1, 32], strides = [1, 1]} : vector<1x128xf32> to vector<1x32xf32>
    %125 = vector.extract_strided_slice %11 {offsets = [0, 96], sizes = [1, 32], strides = [1, 1]} : vector<1x128xf32> to vector<1x32xf32>
    %cst_66 = arith.constant dense<0.000000e+00> : vector<8xf32>
    %126 = vector.multi_reduction <add>, %123, %cst_66 [1] : vector<8x32xf32> to vector<8xf32>
    %127 = vector.shape_cast %126 : vector<8xf32> to vector<8x1xf32>
    %cst_67 = arith.constant 3.200000e+01 : f32
    %128 = vector.broadcast %cst_67 : f32 to vector<8x1xf32>
    %129 = arith.divf %127, %128 : vector<8x1xf32>
    %130 = vector.broadcast %129 : vector<8x1xf32> to vector<8x32xf32>
    %131 = arith.subf %123, %130 : vector<8x32xf32>
    %132 = arith.mulf %131, %131 : vector<8x32xf32>
    %cst_68 = arith.constant dense<0.000000e+00> : vector<8xf32>
    %133 = vector.multi_reduction <add>, %132, %cst_68 [1] : vector<8x32xf32> to vector<8xf32>
    %134 = vector.shape_cast %133 : vector<8xf32> to vector<8x1xf32>
    %cst_69 = arith.constant 3.200000e+01 : f32
    %135 = vector.broadcast %cst_69 : f32 to vector<8x1xf32>
    %136 = arith.divf %134, %135 : vector<8x1xf32>
    %137 = vector.broadcast %129 : vector<8x1xf32> to vector<8x32xf32>
    %138 = arith.subf %123, %137 : vector<8x32xf32>
    %139 = vector.broadcast %124 : vector<1x32xf32> to vector<8x32xf32>
    %140 = arith.mulf %139, %138 : vector<8x32xf32>
    %cst_70 = arith.constant 9.99999974E-6 : f32
    %141 = vector.broadcast %cst_70 : f32 to vector<8x1xf32>
    %142 = arith.addf %136, %141 : vector<8x1xf32>
    %143 = math.rsqrt %142 : vector<8x1xf32>
    %144 = vector.broadcast %143 : vector<8x1xf32> to vector<8x32xf32>
    %145 = arith.mulf %140, %144 : vector<8x32xf32>
    %146 = vector.broadcast %125 : vector<1x32xf32> to vector<8x32xf32>
    %147 = arith.addf %145, %146 : vector<8x32xf32>
    %c0_71 = arith.constant 0 : index
    %c1_72 = arith.constant 1 : index
    %c0_73 = arith.constant 0 : index
    %148 = vector.load %arg3[%c0_71, %c1_72, %c0_73] : memref<1x2x128xf32, #tpu.memory_space<vmem>>, vector<1x1x128xf32>
    %149 = vector.shape_cast %148 : vector<1x1x128xf32> to vector<128xf32>
    %150 = vector.shape_cast %149 : vector<128xf32> to vector<1x128xf32>
    %151 = arith.truncf %147 : vector<8x32xf32> to vector<8x32xbf16>
    %c1_74 = arith.constant 1 : index
    %c0_75 = arith.constant 0 : index
    %c0_76 = arith.constant 0 : index
    %c0_77 = arith.constant 0 : index
    %152 = vector.load %arg4[%c1_74, %c0_75, %c0_76, %c0_77] : memref<2x2x32x48xbf16, #tpu.memory_space<vmem>>, vector<1x1x32x48xbf16>
    %153 = vector.shape_cast %152 : vector<1x1x32x48xbf16> to vector<32x48xbf16>
    %cst_78 = arith.constant dense<0.000000e+00> : vector<8x48xf32>
    %154 = tpu.matmul %151, %153, %cst_78 {dimension_numbers = #tpu.dot_dimension_numbers<[1], [0], [0], [1], [0, 0, 1, 1], [], []>} : vector<8x32xbf16>, vector<32x48xbf16>, vector<8x48xf32> -> vector<8x48xf32>
    %c1_79 = arith.constant 1 : index
    %c0_80 = arith.constant 0 : index
    %c0_81 = arith.constant 0 : index
    %c0_82 = arith.constant 0 : index
    %155 = vector.load %arg5[%c1_79, %c0_80, %c0_81, %c0_82] : memref<2x2x1x48xf32, #tpu.memory_space<vmem>>, vector<1x1x1x48xf32>
    %156 = vector.shape_cast %155 : vector<1x1x1x48xf32> to vector<1x48xf32>
    %157 = vector.broadcast %156 : vector<1x48xf32> to vector<8x48xf32>
    %158 = arith.addf %154, %157 : vector<8x48xf32>
    %159 = arith.truncf %158 : vector<8x48xf32> to vector<8x48xbf16>
    %160 = vector.extract_strided_slice %159 {offsets = [0, 0], sizes = [8, 16], strides = [1, 1]} : vector<8x48xbf16> to vector<8x16xbf16>
    %161 = vector.extract_strided_slice %159 {offsets = [0, 16], sizes = [8, 16], strides = [1, 1]} : vector<8x48xbf16> to vector<8x16xbf16>
    %162 = vector.extract_strided_slice %159 {offsets = [0, 32], sizes = [8, 16], strides = [1, 1]} : vector<8x48xbf16> to vector<8x16xbf16>
    %cst_83 = arith.constant dense<0.000000e+00> : vector<8x8xf32>
    %163 = tpu.matmul %160, %161, %cst_83 {dimension_numbers = #tpu.dot_dimension_numbers<[1], [1], [0], [0], [0, 0, 1, 0], [], []>} : vector<8x16xbf16>, vector<8x16xbf16>, vector<8x8xf32> -> vector<8x8xf32>
    %164 = vector.broadcast %7 : vector<1x8xf32> to vector<8x8xf32>
    %165 = arith.addf %163, %164 : vector<8x8xf32>
    %cst_84 = arith.constant dense<0xFF800000> : vector<8xf32>
    %166 = vector.multi_reduction <maximumf>, %165, %cst_84 [1] : vector<8x8xf32> to vector<8xf32>
    %167 = vector.shape_cast %166 : vector<8xf32> to vector<8x1xf32>
    %168 = vector.broadcast %167 : vector<8x1xf32> to vector<8x8xf32>
    %169 = arith.subf %165, %168 : vector<8x8xf32>
    %170 = math.exp %169 : vector<8x8xf32>
    %cst_85 = arith.constant dense<0.000000e+00> : vector<8xf32>
    %171 = vector.multi_reduction <add>, %170, %cst_85 [1] : vector<8x8xf32> to vector<8xf32>
    %172 = vector.shape_cast %171 : vector<8xf32> to vector<8x1xf32>
    %173 = tpu.reciprocal %172 {approx = true} : vector<8x1xf32> -> vector<8x1xf32>
    %174 = vector.broadcast %173 : vector<8x1xf32> to vector<8x8xf32>
    %175 = arith.mulf %170, %174 : vector<8x8xf32>
    %176 = arith.truncf %175 : vector<8x8xf32> to vector<8x8xbf16>
    %cst_86 = arith.constant dense<0.000000e+00> : vector<8x16xf32>
    %177 = tpu.matmul %176, %162, %cst_86 {dimension_numbers = #tpu.dot_dimension_numbers<[1], [0], [0], [1], [0, 0, 1, 1], [], []>} : vector<8x8xbf16>, vector<8x16xbf16>, vector<8x16xf32> -> vector<8x16xf32>
    %c0_87 = arith.constant 0 : index
    %c0_88 = arith.constant 0 : index
    %178 = vector.load %arg13[%c0_87, %c0_88] : memref<8x32xf32, #tpu.memory_space<vmem>>, vector<8x16xf32>
    tpu.vector_store %arg13[%c0_87, %c0_88], %177 {strides = array<i32>} : memref<8x32xf32, #tpu.memory_space<vmem>>, vector<8x16xf32>,
    %c1_89 = arith.constant 1 : index
    %c1_90 = arith.constant 1 : index
    %c0_91 = arith.constant 0 : index
    %c0_92 = arith.constant 0 : index
    %179 = vector.load %arg4[%c1_89, %c1_90, %c0_91, %c0_92] : memref<2x2x32x48xbf16, #tpu.memory_space<vmem>>, vector<1x1x32x48xbf16>
    %180 = vector.shape_cast %179 : vector<1x1x32x48xbf16> to vector<32x48xbf16>
    %cst_93 = arith.constant dense<0.000000e+00> : vector<8x48xf32>
    %181 = tpu.matmul %151, %180, %cst_93 {dimension_numbers = #tpu.dot_dimension_numbers<[1], [0], [0], [1], [0, 0, 1, 1], [], []>} : vector<8x32xbf16>, vector<32x48xbf16>, vector<8x48xf32> -> vector<8x48xf32>
    %c1_94 = arith.constant 1 : index
    %c1_95 = arith.constant 1 : index
    %c0_96 = arith.constant 0 : index
    %c0_97 = arith.constant 0 : index
    %182 = vector.load %arg5[%c1_94, %c1_95, %c0_96, %c0_97] : memref<2x2x1x48xf32, #tpu.memory_space<vmem>>, vector<1x1x1x48xf32>
    %183 = vector.shape_cast %182 : vector<1x1x1x48xf32> to vector<1x48xf32>
    %184 = vector.broadcast %183 : vector<1x48xf32> to vector<8x48xf32>
    %185 = arith.addf %181, %184 : vector<8x48xf32>
    %186 = arith.truncf %185 : vector<8x48xf32> to vector<8x48xbf16>
    %187 = vector.extract_strided_slice %186 {offsets = [0, 0], sizes = [8, 16], strides = [1, 1]} : vector<8x48xbf16> to vector<8x16xbf16>
    %188 = vector.extract_strided_slice %186 {offsets = [0, 16], sizes = [8, 16], strides = [1, 1]} : vector<8x48xbf16> to vector<8x16xbf16>
    %189 = vector.extract_strided_slice %186 {offsets = [0, 32], sizes = [8, 16], strides = [1, 1]} : vector<8x48xbf16> to vector<8x16xbf16>
    %cst_98 = arith.constant dense<0.000000e+00> : vector<8x8xf32>
    %190 = tpu.matmul %187, %188, %cst_98 {dimension_numbers = #tpu.dot_dimension_numbers<[1], [1], [0], [0], [0, 0, 1, 0], [], []>} : vector<8x16xbf16>, vector<8x16xbf16>, vector<8x8xf32> -> vector<8x8xf32>
    %191 = vector.broadcast %7 : vector<1x8xf32> to vector<8x8xf32>
    %192 = arith.addf %190, %191 : vector<8x8xf32>
    %cst_99 = arith.constant dense<0xFF800000> : vector<8xf32>
    %193 = vector.multi_reduction <maximumf>, %192, %cst_99 [1] : vector<8x8xf32> to vector<8xf32>
    %194 = vector.shape_cast %193 : vector<8xf32> to vector<8x1xf32>
    %195 = vector.broadcast %194 : vector<8x1xf32> to vector<8x8xf32>
    %196 = arith.subf %192, %195 : vector<8x8xf32>
    %197 = math.exp %196 : vector<8x8xf32>
    %cst_100 = arith.constant dense<0.000000e+00> : vector<8xf32>
    %198 = vector.multi_reduction <add>, %197, %cst_100 [1] : vector<8x8xf32> to vector<8xf32>
    %199 = vector.shape_cast %198 : vector<8xf32> to vector<8x1xf32>
    %200 = tpu.reciprocal %199 {approx = true} : vector<8x1xf32> -> vector<8x1xf32>
    %201 = vector.broadcast %200 : vector<8x1xf32> to vector<8x8xf32>
    %202 = arith.mulf %197, %201 : vector<8x8xf32>
    %203 = arith.truncf %202 : vector<8x8xf32> to vector<8x8xbf16>
    %cst_101 = arith.constant dense<0.000000e+00> : vector<8x16xf32>
    %204 = tpu.matmul %203, %189, %cst_101 {dimension_numbers = #tpu.dot_dimension_numbers<[1], [0], [0], [1], [0, 0, 1, 1], [], []>} : vector<8x8xbf16>, vector<8x16xbf16>, vector<8x16xf32> -> vector<8x16xf32>
    %c0_102 = arith.constant 0 : index
    %c16_103 = arith.constant 16 : index
    %205 = vector.load %arg13[%c0_102, %c16_103] : memref<8x32xf32, #tpu.memory_space<vmem>>, vector<8x16xf32>
    tpu.vector_store %arg13[%c0_102, %c16_103], %204 {strides = array<i32>} : memref<8x32xf32, #tpu.memory_space<vmem>>, vector<8x16xf32>,
    %c0_104 = arith.constant 0 : index
    %c0_105 = arith.constant 0 : index
    %206 = vector.load %arg13[%c0_104, %c0_105] : memref<8x32xf32, #tpu.memory_space<vmem>>, vector<8x32xf32>
    %207 = arith.truncf %206 : vector<8x32xf32> to vector<8x32xbf16>
    %c1_106 = arith.constant 1 : index
    %c0_107 = arith.constant 0 : index
    %c0_108 = arith.constant 0 : index
    %208 = vector.load %arg6[%c1_106, %c0_107, %c0_108] : memref<2x32x32xbf16, #tpu.memory_space<vmem>>, vector<1x32x32xbf16>
    %209 = vector.shape_cast %208 : vector<1x32x32xbf16> to vector<32x32xbf16>
    %cst_109 = arith.constant dense<0.000000e+00> : vector<8x32xf32>
    %210 = tpu.matmul %207, %209, %cst_109 {dimension_numbers = #tpu.dot_dimension_numbers<[1], [0], [0], [1], [0, 0, 1, 1], [], []>} : vector<8x32xbf16>, vector<32x32xbf16>, vector<8x32xf32> -> vector<8x32xf32>
    %c1_110 = arith.constant 1 : index
    %c0_111 = arith.constant 0 : index
    %c0_112 = arith.constant 0 : index
    %211 = vector.load %arg7[%c1_110, %c0_111, %c0_112] : memref<2x1x32xf32, #tpu.memory_space<vmem>>, vector<1x1x32xf32>
    %212 = vector.shape_cast %211 : vector<1x1x32xf32> to vector<1x32xf32>
    %213 = vector.broadcast %212 : vector<1x32xf32> to vector<8x32xf32>
    %214 = arith.addf %210, %213 : vector<8x32xf32>
    %215 = arith.addf %147, %214 : vector<8x32xf32>
    %216 = vector.broadcast %8 : vector<8x1xf32> to vector<8x32xf32>
    %217 = arith.mulf %215, %216 : vector<8x32xf32>
    %218 = vector.extract_strided_slice %150 {offsets = [0, 0], sizes = [1, 32], strides = [1, 1]} : vector<1x128xf32> to vector<1x32xf32>
    %219 = vector.extract_strided_slice %150 {offsets = [0, 32], sizes = [1, 32], strides = [1, 1]} : vector<1x128xf32> to vector<1x32xf32>
    %cst_113 = arith.constant dense<0.000000e+00> : vector<8xf32>
    %220 = vector.multi_reduction <add>, %217, %cst_113 [1] : vector<8x32xf32> to vector<8xf32>
    %221 = vector.shape_cast %220 : vector<8xf32> to vector<8x1xf32>
    %cst_114 = arith.constant 3.200000e+01 : f32
    %222 = vector.broadcast %cst_114 : f32 to vector<8x1xf32>
    %223 = arith.divf %221, %222 : vector<8x1xf32>
    %224 = vector.broadcast %223 : vector<8x1xf32> to vector<8x32xf32>
    %225 = arith.subf %217, %224 : vector<8x32xf32>
    %226 = arith.mulf %225, %225 : vector<8x32xf32>
    %cst_115 = arith.constant dense<0.000000e+00> : vector<8xf32>
    %227 = vector.multi_reduction <add>, %226, %cst_115 [1] : vector<8x32xf32> to vector<8xf32>
    %228 = vector.shape_cast %227 : vector<8xf32> to vector<8x1xf32>
    %cst_116 = arith.constant 3.200000e+01 : f32
    %229 = vector.broadcast %cst_116 : f32 to vector<8x1xf32>
    %230 = arith.divf %228, %229 : vector<8x1xf32>
    %231 = vector.broadcast %223 : vector<8x1xf32> to vector<8x32xf32>
    %232 = arith.subf %217, %231 : vector<8x32xf32>
    %233 = vector.broadcast %218 : vector<1x32xf32> to vector<8x32xf32>
    %234 = arith.mulf %233, %232 : vector<8x32xf32>
    %cst_117 = arith.constant 9.99999974E-6 : f32
    %235 = vector.broadcast %cst_117 : f32 to vector<8x1xf32>
    %236 = arith.addf %230, %235 : vector<8x1xf32>
    %237 = math.rsqrt %236 : vector<8x1xf32>
    %238 = vector.broadcast %237 : vector<8x1xf32> to vector<8x32xf32>
    %239 = arith.mulf %234, %238 : vector<8x32xf32>
    %240 = vector.broadcast %219 : vector<1x32xf32> to vector<8x32xf32>
    %241 = arith.addf %239, %240 : vector<8x32xf32>
    %242 = arith.truncf %241 : vector<8x32xf32> to vector<8x32xbf16>
    %c1_118 = arith.constant 1 : index
    %c0_119 = arith.constant 0 : index
    %c0_120 = arith.constant 0 : index
    %243 = vector.load %arg8[%c1_118, %c0_119, %c0_120] : memref<2x32x64xbf16, #tpu.memory_space<vmem>>, vector<1x32x64xbf16>
    %244 = vector.shape_cast %243 : vector<1x32x64xbf16> to vector<32x64xbf16>
    %cst_121 = arith.constant dense<0.000000e+00> : vector<8x64xf32>
    %245 = tpu.matmul %242, %244, %cst_121 {dimension_numbers = #tpu.dot_dimension_numbers<[1], [0], [0], [1], [0, 0, 1, 1], [], []>} : vector<8x32xbf16>, vector<32x64xbf16>, vector<8x64xf32> -> vector<8x64xf32>
    %c1_122 = arith.constant 1 : index
    %c0_123 = arith.constant 0 : index
    %c0_124 = arith.constant 0 : index
    %246 = vector.load %arg9[%c1_122, %c0_123, %c0_124] : memref<2x1x64xf32, #tpu.memory_space<vmem>>, vector<1x1x64xf32>
    %247 = vector.shape_cast %246 : vector<1x1x64xf32> to vector<1x64xf32>
    %248 = vector.broadcast %247 : vector<1x64xf32> to vector<8x64xf32>
    %249 = arith.addf %245, %248 : vector<8x64xf32>
    %cst_125 = arith.constant 0.000000e+00 : f32
    %250 = vector.broadcast %cst_125 : f32 to vector<8x64xf32>
    %251 = arith.maximumf %249, %250 : vector<8x64xf32>
    %252 = arith.truncf %251 : vector<8x64xf32> to vector<8x64xbf16>
    %c1_126 = arith.constant 1 : index
    %c0_127 = arith.constant 0 : index
    %c0_128 = arith.constant 0 : index
    %253 = vector.load %arg10[%c1_126, %c0_127, %c0_128] : memref<2x64x32xbf16, #tpu.memory_space<vmem>>, vector<1x64x32xbf16>
    %254 = vector.shape_cast %253 : vector<1x64x32xbf16> to vector<64x32xbf16>
    %cst_129 = arith.constant dense<0.000000e+00> : vector<8x32xf32>
    %255 = tpu.matmul %252, %254, %cst_129 {dimension_numbers = #tpu.dot_dimension_numbers<[1], [0], [0], [1], [0, 0, 1, 1], [], []>} : vector<8x64xbf16>, vector<64x32xbf16>, vector<8x32xf32> -> vector<8x32xf32>
    %c1_130 = arith.constant 1 : index
    %c0_131 = arith.constant 0 : index
    %c0_132 = arith.constant 0 : index
    %256 = vector.load %arg11[%c1_130, %c0_131, %c0_132] : memref<2x1x32xf32, #tpu.memory_space<vmem>>, vector<1x1x32xf32>
    %257 = vector.shape_cast %256 : vector<1x1x32xf32> to vector<1x32xf32>
    %258 = vector.broadcast %257 : vector<1x32xf32> to vector<8x32xf32>
    %259 = arith.addf %255, %258 : vector<8x32xf32>
    %260 = arith.addf %241, %259 : vector<8x32xf32>
    %261 = vector.broadcast %8 : vector<8x1xf32> to vector<8x32xf32>
    %262 = arith.mulf %260, %261 : vector<8x32xf32>
    %263 = vector.extract_strided_slice %150 {offsets = [0, 64], sizes = [1, 32], strides = [1, 1]} : vector<1x128xf32> to vector<1x32xf32>
    %264 = vector.extract_strided_slice %150 {offsets = [0, 96], sizes = [1, 32], strides = [1, 1]} : vector<1x128xf32> to vector<1x32xf32>
    %cst_133 = arith.constant dense<0.000000e+00> : vector<8xf32>
    %265 = vector.multi_reduction <add>, %262, %cst_133 [1] : vector<8x32xf32> to vector<8xf32>
    %266 = vector.shape_cast %265 : vector<8xf32> to vector<8x1xf32>
    %cst_134 = arith.constant 3.200000e+01 : f32
    %267 = vector.broadcast %cst_134 : f32 to vector<8x1xf32>
    %268 = arith.divf %266, %267 : vector<8x1xf32>
    %269 = vector.broadcast %268 : vector<8x1xf32> to vector<8x32xf32>
    %270 = arith.subf %262, %269 : vector<8x32xf32>
    %271 = arith.mulf %270, %270 : vector<8x32xf32>
    %cst_135 = arith.constant dense<0.000000e+00> : vector<8xf32>
    %272 = vector.multi_reduction <add>, %271, %cst_135 [1] : vector<8x32xf32> to vector<8xf32>
    %273 = vector.shape_cast %272 : vector<8xf32> to vector<8x1xf32>
    %cst_136 = arith.constant 3.200000e+01 : f32
    %274 = vector.broadcast %cst_136 : f32 to vector<8x1xf32>
    %275 = arith.divf %273, %274 : vector<8x1xf32>
    %276 = vector.broadcast %268 : vector<8x1xf32> to vector<8x32xf32>
    %277 = arith.subf %262, %276 : vector<8x32xf32>
    %278 = vector.broadcast %263 : vector<1x32xf32> to vector<8x32xf32>
    %279 = arith.mulf %278, %277 : vector<8x32xf32>
    %cst_137 = arith.constant 9.99999974E-6 : f32
    %280 = vector.broadcast %cst_137 : f32 to vector<8x1xf32>
    %281 = arith.addf %275, %280 : vector<8x1xf32>
    %282 = math.rsqrt %281 : vector<8x1xf32>
    %283 = vector.broadcast %282 : vector<8x1xf32> to vector<8x32xf32>
    %284 = arith.mulf %279, %283 : vector<8x32xf32>
    %285 = vector.broadcast %264 : vector<1x32xf32> to vector<8x32xf32>
    %286 = arith.addf %284, %285 : vector<8x32xf32>
    %c0_138 = arith.constant 0 : index
    %c0_139 = arith.constant 0 : index
    %c0_140 = arith.constant 0 : index
    %287 = vector.load %arg12[%c0_138, %c0_139, %c0_140] : memref<1x8x32xf32, #tpu.memory_space<vmem>>, vector<1x8x32xf32>
    %288 = vector.shape_cast %287 : vector<1x8x32xf32> to vector<8x32xf32>
    %289 = vector.shape_cast %286 : vector<8x32xf32> to vector<1x8x32xf32>
    tpu.vector_store %arg12[%c0_138, %c0_139, %c0_140], %289 {strides = array<i32>} : memref<1x8x32xf32, #tpu.memory_space<vmem>>, vector<1x8x32xf32>,
    return
  }
  func.func @transform_0(%arg0: i32) -> (i32, i32, i32) {
    %c0_i32 = arith.constant 0 : i32
    %c0_i32_0 = arith.constant 0 : i32
    %c0_i32_1 = arith.constant 0 : i32
    return %arg0, %c0_i32, %c0_i32_0 : i32, i32, i32
  }
  func.func @transform_1(%arg0: i32) -> (i32, i32, i32) {
    %c0_i32 = arith.constant 0 : i32
    %c0_i32_0 = arith.constant 0 : i32
    %c0_i32_1 = arith.constant 0 : i32
    return %arg0, %c0_i32, %c0_i32_0 : i32, i32, i32
  }
  func.func @transform_2(%arg0: i32) -> (i32, i32, i32) {
    %c0_i32 = arith.constant 0 : i32
    %c0_i32_0 = arith.constant 0 : i32
    %c0_i32_1 = arith.constant 0 : i32
    return %arg0, %c0_i32, %c0_i32_0 : i32, i32, i32
  }
  func.func @transform_3(%arg0: i32) -> (i32, i32, i32, i32) {
    %c0_i32 = arith.constant 0 : i32
    %c0_i32_0 = arith.constant 0 : i32
    %c0_i32_1 = arith.constant 0 : i32
    %c0_i32_2 = arith.constant 0 : i32
    %c0_i32_3 = arith.constant 0 : i32
    return %c0_i32, %c0_i32_0, %c0_i32_1, %c0_i32_2 : i32, i32, i32, i32
  }
  func.func @transform_4(%arg0: i32) -> (i32, i32, i32, i32) {
    %c0_i32 = arith.constant 0 : i32
    %c0_i32_0 = arith.constant 0 : i32
    %c0_i32_1 = arith.constant 0 : i32
    %c0_i32_2 = arith.constant 0 : i32
    %c0_i32_3 = arith.constant 0 : i32
    return %c0_i32, %c0_i32_0, %c0_i32_1, %c0_i32_2 : i32, i32, i32, i32
  }
  func.func @transform_5(%arg0: i32) -> (i32, i32, i32) {
    %c0_i32 = arith.constant 0 : i32
    %c0_i32_0 = arith.constant 0 : i32
    %c0_i32_1 = arith.constant 0 : i32
    %c0_i32_2 = arith.constant 0 : i32
    return %c0_i32, %c0_i32_0, %c0_i32_1 : i32, i32, i32
  }
  func.func @transform_6(%arg0: i32) -> (i32, i32, i32) {
    %c0_i32 = arith.constant 0 : i32
    %c0_i32_0 = arith.constant 0 : i32
    %c0_i32_1 = arith.constant 0 : i32
    %c0_i32_2 = arith.constant 0 : i32
    return %c0_i32, %c0_i32_0, %c0_i32_1 : i32, i32, i32
  }
  func.func @transform_7(%arg0: i32) -> (i32, i32, i32) {
    %c0_i32 = arith.constant 0 : i32
    %c0_i32_0 = arith.constant 0 : i32
    %c0_i32_1 = arith.constant 0 : i32
    %c0_i32_2 = arith.constant 0 : i32
    return %c0_i32, %c0_i32_0, %c0_i32_1 : i32, i32, i32
  }
  func.func @transform_8(%arg0: i32) -> (i32, i32, i32) {
    %c0_i32 = arith.constant 0 : i32
    %c0_i32_0 = arith.constant 0 : i32
    %c0_i32_1 = arith.constant 0 : i32
    %c0_i32_2 = arith.constant 0 : i32
    return %c0_i32, %c0_i32_0, %c0_i32_1 : i32, i32, i32
  }
  func.func @transform_9(%arg0: i32) -> (i32, i32, i32) {
    %c0_i32 = arith.constant 0 : i32
    %c0_i32_0 = arith.constant 0 : i32
    %c0_i32_1 = arith.constant 0 : i32
    %c0_i32_2 = arith.constant 0 : i32
    return %c0_i32, %c0_i32_0, %c0_i32_1 : i32, i32, i32
  }
  func.func @transform_10(%arg0: i32) -> (i32, i32, i32) {
    %c0_i32 = arith.constant 0 : i32
    %c0_i32_0 = arith.constant 0 : i32
    %c0_i32_1 = arith.constant 0 : i32
    %c0_i32_2 = arith.constant 0 : i32
    return %c0_i32, %c0_i32_0, %c0_i32_1 : i32, i32, i32
  }
  func.func @transform_11(%arg0: i32) -> (i32, i32, i32) {
    %c0_i32 = arith.constant 0 : i32
    %c0_i32_0 = arith.constant 0 : i32
    %c0_i32_1 = arith.constant 0 : i32
    return %arg0, %c0_i32, %c0_i32_0 : i32, i32, i32
  }
}

</mosaic_0001>

<llo_original>
// kernel: pitch_predictor_forward.1
$region0: #{pitch_predictor_forward.1}
  #allocation0 [shape = 'u32[]', space=smem, size = 0x4, offset = 0x4, fixed_abs, tag = 'smem constant byte address 0x4 - core index']
  #allocation1 [shape = 'u32[144,128]{1,0:T(1,128)}', space=vmem, size = 0x12000, scoped, tag = 'internal scratch']
  #allocation2 [shape = 'f32[8,32]{1,0:T(8,128)}', space=vmem, size = 0x1000, scoped, tag = 'scratch operand']
  %s0 = inlined_call_operand.vmem [shape: f32[2,8,32], index: 0, kind: input, shape index: {}]
  %s1 = inlined_call_operand.vmem [shape: f32[2,1,8], index: 1, kind: input, shape index: {}]
  %s2 = inlined_call_operand.vmem [shape: f32[2,2,128], index: 2, kind: input, shape index: {}]
  %s3 = inlined_call_operand.vmem [shape: bf16[2,2,32,48], index: 3, kind: input, shape index: {}]
  %s4 = inlined_call_operand.hbm [shape: f32[2,2,1,48], index: 4, kind: input, shape index: {}]
  %s5 = inlined_call_operand.vmem [shape: bf16[2,32,32], index: 5, kind: input, shape index: {}]
  %s6 = inlined_call_operand.hbm [shape: f32[2,1,32], index: 6, kind: input, shape index: {}]
  %s7 = inlined_call_operand.vmem [shape: bf16[2,32,64], index: 7, kind: input, shape index: {}]
  %s8 = inlined_call_operand.hbm [shape: f32[2,1,64], index: 8, kind: input, shape index: {}]
  %s9 = inlined_call_operand.vmem [shape: bf16[2,64,32], index: 9, kind: input, shape index: {}]
  %s10 = inlined_call_operand.hbm [shape: f32[2,1,32], index: 10, kind: input, shape index: {}]
  %s11 = inlined_call_operand.hbm [shape: f32[2,8,32], index: 11, kind: output, shape index: {}]
  %s12 = sld [smem:[#allocation0]]
  $region93: #{pitch_predictor_forward.1} parent=0
    _
  %s14 = ssub.s32 1, %s12
  %s15 = scalar_select 0, %s14, %s12
  $region1: #{pitch_predictor_forward.1} parent=0
    #allocation3 [shape = 'u8[2048]{0}', space=vmem, size = 0x800, scoped, tag = 'input window, operand 4, single buffered']
    #allocation4 [shape = 's32[2]{0}', space=sflag, size = 0x8, scoped, tag = 'scoped memory for pitch_predictor_forward.1']
    #allocation5 [shape = 's32[2]{0}', space=sflag, size = 0x8, scoped, tag = 'scoped memory for pitch_predictor_forward.1']
    #allocation6 [shape = 'u8[1024]{0}', space=vmem, size = 0x400, scoped, tag = 'input window, operand 6, single buffered']
    #allocation7 [shape = 's32[1]{0}', space=sflag, size = 0x4, scoped, tag = 'scoped memory for pitch_predictor_forward.1']
    #allocation8 [shape = 'u8[1024]{0}', space=vmem, size = 0x400, scoped, tag = 'input window, operand 8, single buffered']
    #allocation9 [shape = 'u8[1024]{0}', space=vmem, size = 0x400, scoped, tag = 'input window, operand 10, single buffered']
    #allocation10 [shape = 's32[1]{0}', space=sflag, size = 0x4, scoped, tag = 'scoped memory for pitch_predictor_forward.1']
    #allocation11 [shape = 'u8[8192]{0}', space=vmem, size = 0x2000, scoped, tag = 'output window, operand 0']
    %16 = vsyncpa [#allocation4], 0
    %17 = vsyncpa [#allocation7], 0
    %18 = vsyncpa [#allocation10], 0
    %19 = vsyncpa [#allocation5], 0
    %s20 = scalar_lea.sflag [#allocation5], 1
    %21 = vsyncpa %s20, 0
    loop: start=0, step=1, limit=4
    $region2: #{pitch_predictor_forward.1} parent=1 // loop_pre_header
      _
    $region3: #{pitch_predictor_forward.1} parent=1 // loop_header
      %s23 = sphi 0, %s27
      %p24 = scmp.ge.s32.totalorder %s23, 4
      %s33 = sphi 0, %s35
      %s36 = sphi 0, %s33
      %s37 = sphi 0, %s36
      %s53 = sphi 0, %s37
      %s59 = sphi 0, %s61
      %s62 = sphi 0, %s59
      %s63 = sphi 0, %s62
      %s79 = sphi 0, %s63
      %s85 = sphi 0, %s87
      %s88 = sphi 0, %s85
      %s89 = sphi 0, %s88
      %s105 = sphi 0, %s89
      %s109 = sphi 0, %s109
      %s111 = sphi 0, %s109
      %s112 = sphi 0, %s111
      %s126 = sphi 0, %s112
      %s130 = sphi 0, %s130
      %s132 = sphi 0, %s130
      %s133 = sphi 0, %s132
      %s147 = sphi 0, %s133
      %s151 = sphi 0, %s151
      %s153 = sphi 0, %s151
      %s154 = sphi 0, %s153
      %s168 = sphi 0, %s154
      %s172 = sphi 0, %s172
      %s174 = sphi 0, %s172
      %s175 = sphi 0, %s174
      %s189 = sphi 0, %s175
      %s193 = sphi 0, %s193
      %s195 = sphi 0, %s193
      %s196 = sphi 0, %s195
      %s210 = sphi 0, %s196
      %s214 = sphi 0, %s214
      %s216 = sphi 0, %s214
      %s217 = sphi 0, %s216
      %s231 = sphi 0, %s217
      %s235 = sphi 0, %s235
      %s237 = sphi 0, %s235
      %s238 = sphi 0, %s237
      %s252 = sphi 0, %s238
      %s256 = sphi 0, %s256
      %s258 = sphi 0, %s256
      %s259 = sphi 0, %s258
      %s273 = sphi 0, %s259
      %s279 = sphi 0, %s281
      %s282 = sphi 0, %s279
      %s283 = sphi 0, %s282
      %s299 = sphi 0, %s283
    $region4: #{pitch_predictor_forward.1} parent=1 // loop_header_branch
      %26 = sbr.rel (%p24) target = $region8
    $region5: #{pitch_predictor_forward.1} parent=1 // loop_body
      %s28 = ssub.s32 %s23, 1
      %s29 = ssub.s32 %s23, 2
      %s30 = sadd.s32 %s23, 1
      %s31 = ssub.s32 %s23, %s30
      %p32 = scmp.eq.s32.totalorder %s31, 0
      %s34 = sadd.s32 %s33, 1
      %s35 = scalar_select %p32, %s33, %s34
      %p38 = pneg %p32
      %p39 = scmp.eq.s32.totalorder %s23, 1
      %p40 = por %p38, %p39
      %p41 = scmp.ne.s32.totalorder %s33, %s36
      %p42 = scmp.eq.s32.totalorder %s23, 0
      %p43 = por %p41, %p42
      %p44 = scmp.ne.s32.totalorder %s33, %s36
      %p45 = scmp.eq.s32.totalorder %s28, 1
      %p46 = por %p44, %p45
      %p47 = scmp.ne.s32.totalorder %s36, %s37
      %p48 = scmp.eq.s32.totalorder %s28, 0
      %p49 = por %p47, %p48
      %p50 = scmp.ne.s32.totalorder %s36, %s37
      %p51 = scmp.eq.s32.totalorder %s29, 1
      %p52 = por %p50, %p51
      %p54 = scmp.ne.s32.totalorder %s37, %s53
      %p55 = scmp.eq.s32.totalorder %s29, 0
      %p56 = por %p54, %p55
      %s57 = ssub.s32 %s23, %s30
      %p58 = scmp.eq.s32.totalorder %s57, 0
      %s60 = sadd.s32 %s59, 1
      %s61 = scalar_select %p58, %s59, %s60
      %p64 = pneg %p58
      %p65 = scmp.eq.s32.totalorder %s23, 1
      %p66 = por %p64, %p65
      %p67 = scmp.ne.s32.totalorder %s59, %s62
      %p68 = scmp.eq.s32.totalorder %s23, 0
      %p69 = por %p67, %p68
      %p70 = scmp.ne.s32.totalorder %s59, %s62
      %p71 = scmp.eq.s32.totalorder %s28, 1
      %p72 = por %p70, %p71
      %p73 = scmp.ne.s32.totalorder %s62, %s63
      %p74 = scmp.eq.s32.totalorder %s28, 0
      %p75 = por %p73, %p74
      %p76 = scmp.ne.s32.totalorder %s62, %s63
      %p77 = scmp.eq.s32.totalorder %s29, 1
      %p78 = por %p76, %p77
      %p80 = scmp.ne.s32.totalorder %s63, %s79
      %p81 = scmp.eq.s32.totalorder %s29, 0
      %p82 = por %p80, %p81
      %s83 = ssub.s32 %s23, %s30
      %p84 = scmp.eq.s32.totalorder %s83, 0
      %s86 = sadd.s32 %s85, 1
      %s87 = scalar_select %p84, %s85, %s86
      %p90 = pneg %p84
      %p91 = scmp.eq.s32.totalorder %s23, 1
      %p92 = por %p90, %p91
      %p93 = scmp.ne.s32.totalorder %s85, %s88
      %p94 = scmp.eq.s32.totalorder %s23, 0
      %p95 = por %p93, %p94
      %p96 = scmp.ne.s32.totalorder %s85, %s88
      %p97 = scmp.eq.s32.totalorder %s28, 1
      %p98 = por %p96, %p97
      %p99 = scmp.ne.s32.totalorder %s88, %s89
      %p100 = scmp.eq.s32.totalorder %s28, 0
      %p101 = por %p99, %p100
      %p102 = scmp.ne.s32.totalorder %s88, %s89
      %p103 = scmp.eq.s32.totalorder %s29, 1
      %p104 = por %p102, %p103
      %p106 = scmp.ne.s32.totalorder %s89, %s105
      %p107 = scmp.eq.s32.totalorder %s29, 0
      %p108 = por %p106, %p107
      %s110 = sadd.s32 %s109, 1
      %p113 = scmp.eq.s32.totalorder %s23, 1
      %p114 = scmp.ne.s32.totalorder %s109, %s111
      %p115 = scmp.eq.s32.totalorder %s23, 0
      %p116 = por %p114, %p115
      %p117 = scmp.ne.s32.totalorder %s109, %s111
      %p118 = scmp.eq.s32.totalorder %s28, 1
      %p119 = por %p117, %p118
      %p120 = scmp.ne.s32.totalorder %s111, %s112
      %p121 = scmp.eq.s32.totalorder %s28, 0
      %p122 = por %p120, %p121
      %p123 = scmp.ne.s32.totalorder %s111, %s112
      %p124 = scmp.eq.s32.totalorder %s29, 1
      %p125 = por %p123, %p124
      %p127 = scmp.ne.s32.totalorder %s112, %s126
      %p128 = scmp.eq.s32.totalorder %s29, 0
      %p129 = por %p127, %p128
      %s131 = sadd.s32 %s130, 1
      %p134 = scmp.eq.s32.totalorder %s23, 1
      %p135 = scmp.ne.s32.totalorder %s130, %s132
      %p136 = scmp.eq.s32.totalorder %s23, 0
      %p137 = por %p135, %p136
      %p138 = scmp.ne.s32.totalorder %s130, %s132
      %p139 = scmp.eq.s32.totalorder %s28, 1
      %p140 = por %p138, %p139
      %p141 = scmp.ne.s32.totalorder %s132, %s133
      %p142 = scmp.eq.s32.totalorder %s28, 0
      %p143 = por %p141, %p142
      %p144 = scmp.ne.s32.totalorder %s132, %s133
      %p145 = scmp.eq.s32.totalorder %s29, 1
      %p146 = por %p144, %p145
      %p148 = scmp.ne.s32.totalorder %s133, %s147
      %p149 = scmp.eq.s32.totalorder %s29, 0
      %p150 = por %p148, %p149
      %s152 = sadd.s32 %s151, 1
      %p155 = scmp.eq.s32.totalorder %s23, 1
      %p156 = scmp.ne.s32.totalorder %s151, %s153
      %p157 = scmp.eq.s32.totalorder %s23, 0
      %p158 = por %p156, %p157
      %p159 = scmp.ne.s32.totalorder %s151, %s153
      %p160 = scmp.eq.s32.totalorder %s28, 1
      %p161 = por %p159, %p160
      %p162 = scmp.ne.s32.totalorder %s153, %s154
      %p163 = scmp.eq.s32.totalorder %s28, 0
      %p164 = por %p162, %p163
      %p165 = scmp.ne.s32.totalorder %s153, %s154
      %p166 = scmp.eq.s32.totalorder %s29, 1
      %p167 = por %p165, %p166
      %p169 = scmp.ne.s32.totalorder %s154, %s168
      %p170 = scmp.eq.s32.totalorder %s29, 0
      %p171 = por %p169, %p170
      %s173 = sadd.s32 %s172, 1
      %p176 = scmp.eq.s32.totalorder %s23, 1
      %p177 = scmp.ne.s32.totalorder %s172, %s174
      %p178 = scmp.eq.s32.totalorder %s23, 0
      %p179 = por %p177, %p178
      %p180 = scmp.ne.s32.totalorder %s172, %s174
      %p181 = scmp.eq.s32.totalorder %s28, 1
      %p182 = por %p180, %p181
      %p183 = scmp.ne.s32.totalorder %s174, %s175
      %p184 = scmp.eq.s32.totalorder %s28, 0
      %p185 = por %p183, %p184
      %p186 = scmp.ne.s32.totalorder %s174, %s175
      %p187 = scmp.eq.s32.totalorder %s29, 1
      %p188 = por %p186, %p187
      %p190 = scmp.ne.s32.totalorder %s175, %s189
      %p191 = scmp.eq.s32.totalorder %s29, 0
      %p192 = por %p190, %p191
      %s194 = sadd.s32 %s193, 1
      %p197 = scmp.eq.s32.totalorder %s23, 1
      %p198 = scmp.ne.s32.totalorder %s193, %s195
      %p199 = scmp.eq.s32.totalorder %s23, 0
      %p200 = por %p198, %p199
      %p201 = scmp.ne.s32.totalorder %s193, %s195
      %p202 = scmp.eq.s32.totalorder %s28, 1
      %p203 = por %p201, %p202
      %p204 = scmp.ne.s32.totalorder %s195, %s196
      %p205 = scmp.eq.s32.totalorder %s28, 0
      %p206 = por %p204, %p205
      %p207 = scmp.ne.s32.totalorder %s195, %s196
      %p208 = scmp.eq.s32.totalorder %s29, 1
      %p209 = por %p207, %p208
      %p211 = scmp.ne.s32.totalorder %s196, %s210
      %p212 = scmp.eq.s32.totalorder %s29, 0
      %p213 = por %p211, %p212
      %s215 = sadd.s32 %s214, 1
      %p218 = scmp.eq.s32.totalorder %s23, 1
      %p219 = scmp.ne.s32.totalorder %s214, %s216
      %p220 = scmp.eq.s32.totalorder %s23, 0
      %p221 = por %p219, %p220
      %p222 = scmp.ne.s32.totalorder %s214, %s216
      %p223 = scmp.eq.s32.totalorder %s28, 1
      %p224 = por %p222, %p223
      %p225 = scmp.ne.s32.totalorder %s216, %s217
      %p226 = scmp.eq.s32.totalorder %s28, 0
      %p227 = por %p225, %p226
      %p228 = scmp.ne.s32.totalorder %s216, %s217
      %p229 = scmp.eq.s32.totalorder %s29, 1
      %p230 = por %p228, %p229
      %p232 = scmp.ne.s32.totalorder %s217, %s231
      %p233 = scmp.eq.s32.totalorder %s29, 0
      %p234 = por %p232, %p233
      %s236 = sadd.s32 %s235, 1
      %p239 = scmp.eq.s32.totalorder %s23, 1
      %p240 = scmp.ne.s32.totalorder %s235, %s237
      %p241 = scmp.eq.s32.totalorder %s23, 0
      %p242 = por %p240, %p241
      %p243 = scmp.ne.s32.totalorder %s235, %s237
      %p244 = scmp.eq.s32.totalorder %s28, 1
      %p245 = por %p243, %p244
      %p246 = scmp.ne.s32.totalorder %s237, %s238
      %p247 = scmp.eq.s32.totalorder %s28, 0
      %p248 = por %p246, %p247
      %p249 = scmp.ne.s32.totalorder %s237, %s238
      %p250 = scmp.eq.s32.totalorder %s29, 1
      %p251 = por %p249, %p250
      %p253 = scmp.ne.s32.totalorder %s238, %s252
      %p254 = scmp.eq.s32.totalorder %s29, 0
      %p255 = por %p253, %p254
      %s257 = sadd.s32 %s256, 1
      %p260 = scmp.eq.s32.totalorder %s23, 1
      %p261 = scmp.ne.s32.totalorder %s256, %s258
      %p262 = scmp.eq.s32.totalorder %s23, 0
      %p263 = por %p261, %p262
      %p264 = scmp.ne.s32.totalorder %s256, %s258
      %p265 = scmp.eq.s32.totalorder %s28, 1
      %p266 = por %p264, %p265
      %p267 = scmp.ne.s32.totalorder %s258, %s259
      %p268 = scmp.eq.s32.totalorder %s28, 0
      %p269 = por %p267, %p268
      %p270 = scmp.ne.s32.totalorder %s258, %s259
      %p271 = scmp.eq.s32.totalorder %s29, 1
      %p272 = por %p270, %p271
      %p274 = scmp.ne.s32.totalorder %s259, %s273
      %p275 = scmp.eq.s32.totalorder %s29, 0
      %p276 = por %p274, %p275
      %s277 = ssub.s32 %s23, %s30
      %p278 = scmp.eq.s32.totalorder %s277, 0
      %s280 = sadd.s32 %s279, 1
      %s281 = scalar_select %p278, %s279, %s280
      %p284 = pneg %p278
      %p285 = scmp.eq.s32.totalorder %s23, 1
      %p286 = por %p284, %p285
      %p287 = scmp.ne.s32.totalorder %s279, %s282
      %p288 = scmp.eq.s32.totalorder %s23, 0
      %p289 = por %p287, %p288
      %p290 = scmp.ne.s32.totalorder %s279, %s282
      %p291 = scmp.eq.s32.totalorder %s28, 1
      %p292 = por %p290, %p291
      %p293 = scmp.ne.s32.totalorder %s282, %s283
      %p294 = scmp.eq.s32.totalorder %s28, 0
      %p295 = por %p293, %p294
      %p296 = scmp.ne.s32.totalorder %s282, %s283
      %p297 = scmp.eq.s32.totalorder %s29, 1
      %p298 = por %p296, %p297
      %p300 = scmp.ne.s32.totalorder %s283, %s299
      %p301 = scmp.eq.s32.totalorder %s29, 0
      %p302 = por %p300, %p301
      %p303 = scmp.le.s32.totalorder 1, %s23
      %p304 = scmp.lt.s32.totalorder %s23, 3
      %p305 = pnand %p303, %p304
      %p306 = pneg %p305
      // Predicated region
      $region9: #{pitch_predictor_forward.1} parent=5 // pred_check
        _
      $region10: #{pitch_predictor_forward.1} parent=5 // pred_check_branch
        %308 = sbr.rel (%p305) target = $region12
      $region11: #{pitch_predictor_forward.1} parent=5 // pred_region
        %s309 = ssub.s32 %s23, 1
        // Predicated region
        $region13: #{pitch_predictor_forward.1} parent=11 // pred_check
          %p310 = pneg %p122
        $region14: #{pitch_predictor_forward.1} parent=11 // pred_check_branch
          %312 = sbr.rel (%p310) target = $region16
        $region15: #{pitch_predictor_forward.1} parent=11 // pred_region
          _
        $region16: #{pitch_predictor_forward.1} parent=11 // pred_fallthru
          _
        // Predicated region
        $region17: #{pitch_predictor_forward.1} parent=11 // pred_check
          %p313 = pneg %p143
        $region18: #{pitch_predictor_forward.1} parent=11 // pred_check_branch
          %315 = sbr.rel (%p313) target = $region20
        $region19: #{pitch_predictor_forward.1} parent=11 // pred_region
          %s317 = ssub.s32 64, 64
          %318 = vsyncadd [#allocation4], %s317
          %s319 = sshll.u32 [#allocation3], 4
          %s320 = int_to_ptr.vmem [resolvable:$true] %s319
          %325 = dma.hbm_to_vmem [thread:$0]  %s4, 64, %s320, [#allocation4], 16, 16, 1
        $region20: #{pitch_predictor_forward.1} parent=11 // pred_fallthru
          _
        // Predicated region
        $region21: #{pitch_predictor_forward.1} parent=11 // pred_check
          %p326 = pneg %p164
        $region22: #{pitch_predictor_forward.1} parent=11 // pred_check_branch
          %328 = sbr.rel (%p326) target = $region24
        $region23: #{pitch_predictor_forward.1} parent=11 // pred_region
          _
        $region24: #{pitch_predictor_forward.1} parent=11 // pred_fallthru
          _
        // Predicated region
        $region25: #{pitch_predictor_forward.1} parent=11 // pred_check
          %p329 = pneg %p185
        $region26: #{pitch_predictor_forward.1} parent=11 // pred_check_branch
          %331 = sbr.rel (%p329) target = $region28
        $region27: #{pitch_predictor_forward.1} parent=11 // pred_region
          %s333 = ssub.s32 32, 32
          %334 = vsyncadd [#allocation7], %s333
          %s335 = sshll.u32 [#allocation6], 4
          %s336 = int_to_ptr.vmem [resolvable:$true] %s335
          %341 = dma.hbm_to_vmem [thread:$0]  %s6, 32, %s336, [#allocation7], 16, 16, 1
        $region28: #{pitch_predictor_forward.1} parent=11 // pred_fallthru
          _
        // Predicated region
        $region29: #{pitch_predictor_forward.1} parent=11 // pred_check
          %p342 = pneg %p206
        $region30: #{pitch_predictor_forward.1} parent=11 // pred_check_branch
          %344 = sbr.rel (%p342) target = $region32
        $region31: #{pitch_predictor_forward.1} parent=11 // pred_region
          _
        $region32: #{pitch_predictor_forward.1} parent=11 // pred_fallthru
          _
        // Predicated region
        $region33: #{pitch_predictor_forward.1} parent=11 // pred_check
          %p345 = pneg %p227
        $region34: #{pitch_predictor_forward.1} parent=11 // pred_check_branch
          %347 = sbr.rel (%p345) target = $region36
        $region35: #{pitch_predictor_forward.1} parent=11 // pred_region
          %s349 = ssub.s32 32, 32
          %350 = vsyncadd [#allocation7], %s349
          %s351 = sshll.u32 [#allocation8], 4
          %s352 = int_to_ptr.vmem [resolvable:$true] %s351
          %357 = dma.hbm_to_vmem [thread:$0]  %s8, 32, %s352, [#allocation7], 16, 16, 1
        $region36: #{pitch_predictor_forward.1} parent=11 // pred_fallthru
          _
        // Predicated region
        $region37: #{pitch_predictor_forward.1} parent=11 // pred_check
          %p358 = pneg %p248
        $region38: #{pitch_predictor_forward.1} parent=11 // pred_check_branch
          %360 = sbr.rel (%p358) target = $region40
        $region39: #{pitch_predictor_forward.1} parent=11 // pred_region
          _
        $region40: #{pitch_predictor_forward.1} parent=11 // pred_fallthru
          _
        // Predicated region
        $region41: #{pitch_predictor_forward.1} parent=11 // pred_check
          %p361 = pneg %p269
        $region42: #{pitch_predictor_forward.1} parent=11 // pred_check_branch
          %363 = sbr.rel (%p361) target = $region44
        $region43: #{pitch_predictor_forward.1} parent=11 // pred_region
          %s365 = ssub.s32 32, 32
          %366 = vsyncadd [#allocation10], %s365
          %s367 = sshll.u32 [#allocation9], 4
          %s368 = int_to_ptr.vmem [resolvable:$true] %s367
          %373 = dma.hbm_to_vmem [thread:$0]  %s10, 32, %s368, [#allocation10], 16, 16, 1
        $region44: #{pitch_predictor_forward.1} parent=11 // pred_fallthru
          _
      $region12: #{pitch_predictor_forward.1} parent=5 // pred_fallthru
        _
      %p374 = scmp.lt.s32.totalorder %s23, 2
      // Predicated region
      $region45: #{pitch_predictor_forward.1} parent=5 // pred_check
        %p375 = pneg %p374
      $region46: #{pitch_predictor_forward.1} parent=5 // pred_check_branch
        %377 = sbr.rel (%p375) target = $region48
      $region47: #{pitch_predictor_forward.1} parent=5 // pred_region
        // Predicated region
        $region49: #{pitch_predictor_forward.1} parent=47 // pred_check
          %p378 = pneg %p43
        $region50: #{pitch_predictor_forward.1} parent=47 // pred_check_branch
          %380 = sbr.rel (%p378) target = $region52
        $region51: #{pitch_predictor_forward.1} parent=47 // pred_region
          %p381 = scmp.lt.s32.totalorder %s23, 1
          %s382 = scalar_select %p381, %s23, 1
          %s383 = smul.addr %s382, 8
          %s384 = scalar_lea.vmem %s0, %s383
        $region52: #{pitch_predictor_forward.1} parent=47 // pred_fallthru
          _
        // Predicated region
        $region53: #{pitch_predictor_forward.1} parent=47 // pred_check
          %p385 = pneg %p69
        $region54: #{pitch_predictor_forward.1} parent=47 // pred_check_branch
          %387 = sbr.rel (%p385) target = $region56
        $region55: #{pitch_predictor_forward.1} parent=47 // pred_region
          %p388 = scmp.lt.s32.totalorder %s23, 1
          %s389 = scalar_select %p388, %s23, 1
          %s390 = scalar_lea.vmem %s1, %s389
        $region56: #{pitch_predictor_forward.1} parent=47 // pred_fallthru
          _
        // Predicated region
        $region57: #{pitch_predictor_forward.1} parent=47 // pred_check
          %p391 = pneg %p95
        $region58: #{pitch_predictor_forward.1} parent=47 // pred_check_branch
          %393 = sbr.rel (%p391) target = $region60
        $region59: #{pitch_predictor_forward.1} parent=47 // pred_region
          %p394 = scmp.lt.s32.totalorder %s23, 1
          %s395 = scalar_select %p394, %s23, 1
          %s396 = smul.addr %s395, 2
          %s397 = scalar_lea.vmem %s2, %s396
        $region60: #{pitch_predictor_forward.1} parent=47 // pred_fallthru
          _
      $region48: #{pitch_predictor_forward.1} parent=5 // pred_fallthru
        _
      %p398 = scmp.le.s32.totalorder 1, %s23
      %p399 = scmp.lt.s32.totalorder %s23, 3
      %p400 = pnand %p398, %p399
      %p401 = pneg %p400
      // Predicated region
      $region61: #{pitch_predictor_forward.1} parent=5 // pred_check
        _
      $region62: #{pitch_predictor_forward.1} parent=5 // pred_check_branch
        %403 = sbr.rel (%p400) target = $region64
      $region63: #{pitch_predictor_forward.1} parent=5 // pred_region
        %s404 = ssub.s32 %s23, 1
        // Predicated region
        $region65: #{pitch_predictor_forward.1} parent=63 // pred_check
          %p405 = pneg %p143
        $region66: #{pitch_predictor_forward.1} parent=63 // pred_check_branch
          %407 = sbr.rel (%p405) target = $region68
        $region67: #{pitch_predictor_forward.1} parent=63 // pred_region
          %408 = dma.done [#allocation4], 64
        $region68: #{pitch_predictor_forward.1} parent=63 // pred_fallthru
          _
        // Predicated region
        $region69: #{pitch_predictor_forward.1} parent=63 // pred_check
          %p409 = pneg %p185
        $region70: #{pitch_predictor_forward.1} parent=63 // pred_check_branch
          %411 = sbr.rel (%p409) target = $region72
        $region71: #{pitch_predictor_forward.1} parent=63 // pred_region
          %412 = dma.done [#allocation7], 32
        $region72: #{pitch_predictor_forward.1} parent=63 // pred_fallthru
          _
        // Predicated region
        $region73: #{pitch_predictor_forward.1} parent=63 // pred_check
          %p413 = pneg %p227
        $region74: #{pitch_predictor_forward.1} parent=63 // pred_check_branch
          %415 = sbr.rel (%p413) target = $region76
        $region75: #{pitch_predictor_forward.1} parent=63 // pred_region
          %416 = dma.done [#allocation7], 32
        $region76: #{pitch_predictor_forward.1} parent=63 // pred_fallthru
          _
        // Predicated region
        $region77: #{pitch_predictor_forward.1} parent=63 // pred_check
          %p417 = pneg %p269
        $region78: #{pitch_predictor_forward.1} parent=63 // pred_check_branch
          %419 = sbr.rel (%p417) target = $region80
        $region79: #{pitch_predictor_forward.1} parent=63 // pred_region
          %420 = dma.done [#allocation10], 32
        $region80: #{pitch_predictor_forward.1} parent=63 // pred_fallthru
          _
        %p421 = scmp.lt.s32.totalorder %s28, 1
        %s422 = scalar_select %p421, %s28, 1
        %s423 = smul.addr %s422, 8
        %s424 = scalar_lea.vmem %s0, %s423
        %p425 = pneg %p49
        %p426 = pneg %p46
        %p427 = scmp.lt.s32.totalorder %s28, 1
        %s428 = scalar_select %p427, %s28, 1
        %s429 = scalar_lea.vmem %s1, %s428
        %p430 = pneg %p75
        %p431 = pneg %p72
        %p432 = scmp.lt.s32.totalorder %s28, 1
        %s433 = scalar_select %p432, %s28, 1
        %s434 = smul.addr %s433, 2
        %s435 = scalar_lea.vmem %s2, %s434
        %p436 = pneg %p101
        %p437 = pneg %p98
        %p438 = pneg %p122
        %p439 = pneg %p119
        %p440 = pneg %p143
        %p441 = pneg %p140
        %p442 = pneg %p164
        %p443 = pneg %p161
        %p444 = pneg %p185
        %p445 = pneg %p182
        %p446 = pneg %p206
        %p447 = pneg %p203
        %p448 = pneg %p227
        %p449 = pneg %p224
        %p450 = pneg %p248
        %p451 = pneg %p245
        %p452 = pneg %p269
        %p453 = pneg %p266
        %p454 = pneg %p295
        %p455 = pneg %p292
        %s456 = sand.u32 %s282, 1
        %s457 = scalar_lea.sflag [#allocation5], %s456
        %s458 = sand.u32 %s282, 1
        %s459 = smul.addr %s458, 8
        %s460 = scalar_lea.vmem [#allocation11], %s459
        %p461 = scmp.lt.s32.totalorder %s28, 1
        %s462 = scalar_select %p461, %s28, 1
        %s463 = smul.addr %s462, 8
        %s464 = scalar_lea.vmem %s0, %s463
        %p465 = scmp.lt.s32.totalorder %s28, 1
        %s466 = scalar_select %p465, %s28, 1
        %s467 = scalar_lea.vmem %s1, %s466
        %p468 = scmp.lt.s32.totalorder %s28, 1
        %s469 = scalar_select %p468, %s28, 1
        %s470 = smul.addr %s469, 2
        %s471 = scalar_lea.vmem %s2, %s470
        %v473 = vld [vmem:[%s464] sm:$0xff]
        %v474 = vld [vmem:[%s467] sm:$0x1]
        %v475 = vsub.f32 %v474, 1.0
        %v476 = vmul.f32 %v475, 1e+09
        %477 = vxpose.xlu0.b32.start [1/16] %v474, 128
        %478 = vxpose.xlu0.b32.cont [2/16] 0.0, 128
        %479 = vxpose.xlu0.b32.cont [3/16] 0.0, 128
        %480 = vxpose.xlu0.b32.cont [4/16] 0.0, 128
        %481 = vxpose.xlu0.b32.cont [5/16] 0.0, 128
        %482 = vxpose.xlu0.b32.cont [6/16] 0.0, 128
        %483 = vxpose.xlu0.b32.cont [7/16] 0.0, 128
        %484 = vxpose.xlu0.b32.cont [8/16] 0.0, 128
        %485 = vxpose.xlu0.b32.cont [9/16] 0.0, 128
        %486 = vxpose.xlu0.b32.cont [10/16] 0.0, 128
        %487 = vxpose.xlu0.b32.cont [11/16] 0.0, 128
        %488 = vxpose.xlu0.b32.cont [12/16] 0.0, 128
        %489 = vxpose.xlu0.b32.cont [13/16] 0.0, 128
        %490 = vxpose.xlu0.b32.cont [14/16] 0.0, 128
        %491 = vxpose.xlu0.b32.cont [15/16] 0.0, 128
        %492 = vxpose.xlu0.b32.end [16/16] 0.0, 128
        %v493 = vpop.trf.xlu0
        %v494 = vpop.trf.xlu0
        %v495 = vpop.trf.xlu0
        %v496 = vpop.trf.xlu0
        %v497 = vpop.trf.xlu0
        %v498 = vpop.trf.xlu0
        %v499 = vpop.trf.xlu0
        %v500 = vpop.trf.xlu0
        %v501 = vpop.trf.xlu0
        %v502 = vpop.trf.xlu0
        %v503 = vpop.trf.xlu0
        %v504 = vpop.trf.xlu0
        %v505 = vpop.trf.xlu0
        %v506 = vpop.trf.xlu0
        %v507 = vpop.trf.xlu0
        %v508 = vpop.trf.xlu0
        %v509 = vld [vmem:[%s471] sm:$0x1]
        %v510 = vpack.c.bf16 %v473, %v473
        %v511 = vld [vmem:[%s3] sm:$0xf]
        %v512 = vld [vmem:[%s3 + $0x4] sm:$0xf]
        %v513 = vld [vmem:[%s3 + $0x8] sm:$0xf]
        %v514 = vld [vmem:[%s3 + $0xc] sm:$0xf]
        %v515 = vld [vmem:[#allocation3] sm:$0x1]
        %v517 = vlaneseq
        %v518 = vshrl.u32 %v517, 7
        %v519 = vsub.s32 0, %v518
        %v520 = vrot.slane %v515, %v519
        %v526 = vunpack.c.l.b16 %v511
        %v527 = vunpack.c.l.b16 %v512
        %v528 = vunpack.c.l.b16 %v513
        %v529 = vunpack.c.l.b16 %v514
        %v530 = vpack.c.b16 %v527, %v526
        %v531 = vpack.c.b16 %v529, %v528
        %vm534 = vcmask 261120
        %v536 = vsel %vm534, %v510, 0
        %538 = vmatprep.subr.bf16.mxu0 0
        %539 = vmatpush1.bf16.msra.mxu0 %v530
        %540 = vmatprep.subr.bf16.mxu0 0
        %541 = vmatpush1.bf16.msra.mxu0 %v531
        %542 = vmatprep.subr.bf16.mxu0 0
        %543 = vmatpush1.bf16.msra.mxu0 0
        %544 = vmatprep.subr.bf16.mxu0 0
        %545 = vmatpush1.bf16.msra.mxu0 0
        %546 = vmatprep.subr.bf16.mxu0 0
        %547 = vmatpush1.bf16.msra.mxu0 0
        %548 = vmatprep.subr.bf16.mxu0 0
        %549 = vmatpush1.bf16.msra.mxu0 0
        %550 = vmatprep.subr.bf16.mxu0 0
        %551 = vmatpush1.bf16.msra.mxu0 0
        %552 = vmatprep.subr.bf16.mxu0 0
        %553 = vmatpush1.bf16.msra.mxu0 0
        %554 = vmatprep.subr.bf16.mxu0 0
        %555 = vmatpush1.bf16.msra.mxu0 0
        %556 = vmatprep.subr.bf16.mxu0 0
        %557 = vmatpush1.bf16.msra.mxu0 0
        %558 = vmatprep.subr.bf16.mxu0 0
        %559 = vmatpush1.bf16.msra.mxu0 0
        %560 = vmatprep.subr.bf16.mxu0 0
        %561 = vmatpush1.bf16.msra.mxu0 0
        %562 = vmatprep.subr.bf16.mxu0 0
        %563 = vmatpush1.bf16.msra.mxu0 0
        %564 = vmatprep.subr.bf16.mxu0 0
        %565 = vmatpush1.bf16.msra.mxu0 0
        %566 = vmatprep.subr.bf16.mxu0 0
        %567 = vmatpush1.bf16.msra.mxu0 0
        %568 = vmatprep.subr.bf16.mxu0 0
        %569 = vmatpush1.bf16.msra.mxu0 0
        %570 = vmatprep.mubr.bf16.mxu0 0
        %571 = vmatmul.mubr.bf16.gmra.mrb[0].mxu0 %v536
        %v572 = vpop.f32.mrb[0].mxu0
        %v573 = vadd.f32 %v520, %v572
        %v574 = vpop.f32.mrb[0].mxu0
        %v575 = vpop.f32.mrb[0].mxu0
        %v576 = vpop.f32.mrb[0].mxu0
        %577 = vdwg.mxu0
        %v578 = vpack.c.bf16 %v573, %v573
        %v580 = vlaneseq
        %v581 = vshrl.u32 %v580, 7
        %v582 = vsub.s32 0, %v581
        %v583 = vrot.slane %v476, %v582
        %586 = vrot.lane.b32.xlu0 %v578, 112
        %v587 = vpop.permute.xlu0 %586
        %vm588 = vcmask 130048
        %v590 = vsel %vm588, %v578, 0
        %v593 = vsel %vm588, %v587, 0
        %595 = vmatprep.subr.bf16.mxu0 0
        %596 = vmatpush1.bf16.xpose.msra.mxu0 %v593
        %597 = vmatprep.subr.bf16.mxu0 0
        %598 = vmatpush1.bf16.xpose.msra.mxu0 0
        %599 = vmatprep.subr.bf16.mxu0 0
        %600 = vmatpush1.bf16.xpose.msra.mxu0 0
        %601 = vmatprep.subr.bf16.mxu0 0
        %602 = vmatpush1.bf16.xpose.msra.mxu0 0
        %603 = vmatprep.subr.bf16.mxu0 0
        %604 = vmatpush1.bf16.xpose.msra.mxu0 0
        %605 = vmatprep.subr.bf16.mxu0 0
        %606 = vmatpush1.bf16.xpose.msra.mxu0 0
        %607 = vmatprep.subr.bf16.mxu0 0
        %608 = vmatpush1.bf16.xpose.msra.mxu0 0
        %609 = vmatprep.subr.bf16.mxu0 0
        %610 = vmatpush1.bf16.xpose.msra.mxu0 0
        %611 = vmatprep.subr.bf16.mxu0 0
        %612 = vmatpush1.bf16.xpose.msra.mxu0 0
        %613 = vmatprep.subr.bf16.mxu0 0
        %614 = vmatpush1.bf16.xpose.msra.mxu0 0
        %615 = vmatprep.subr.bf16.mxu0 0
        %616 = vmatpush1.bf16.xpose.msra.mxu0 0
        %617 = vmatprep.subr.bf16.mxu0 0
        %618 = vmatpush1.bf16.xpose.msra.mxu0 0
        %619 = vmatprep.subr.bf16.mxu0 0
        %620 = vmatpush1.bf16.xpose.msra.mxu0 0
        %621 = vmatprep.subr.bf16.mxu0 0
        %622 = vmatpush1.bf16.xpose.msra.mxu0 0
        %623 = vmatprep.subr.bf16.mxu0 0
        %624 = vmatpush1.bf16.xpose.msra.mxu0 0
        %625 = vmatprep.subr.bf16.mxu0 0
        %626 = vmatpush1.bf16.xpose.msra.mxu0 0
        %627 = vmatprep.mubr.bf16.mxu0 0
        %628 = vmatmul.mubr.bf16.gmra.mrb[0].mxu0 %v590
        %v629 = vpop.f32.mrb[0].mxu0
        %v630 = vadd.f32 %v583, %v629
        %v631 = vpop.f32.mrb[0].mxu0
        %v632 = vpop.f32.mrb[0].mxu0
        %v633 = vpop.f32.mrb[0].mxu0
        %634 = vdwg.mxu0
        %vm635 = vcmask 64512
        %v636 = vsel %vm635, %v630, -inf
        %637 = vmax.xlane.f32.xlu0 %v636
        %v638 = vpop.xlane.xlu0 %637
        %v639 = vsub.f32 %v630, %v638
        %v640 = vmul.f32 %v639, 1.442695
        %v641 = vpow.pop %v640
        %v642 = vsel %vm635, %v641, 0.0
        %643 = vadd.xlane.f32.xlu0 %v642
        %v644 = vpop.xlane.xlu0 %643
        %v645 = vrcp.pop %v644
        %v646 = vmul.f32 %v641, %v645
        %v647 = vpack.c.bf16 %v646, %v646
        %648 = vrot.lane.b32.xlu0 %v578, 96
        %v649 = vpop.permute.xlu0 %648
        %v651 = vsel %vm635, %v647, 0
        %vm653 = vcmask 1043456
        %v655 = vsel %vm653, %v649, 0
        %657 = vmatprep.subr.bf16.mxu0 0
        %658 = vmatpush1.bf16.msra.mxu0 %v655
        %659 = vmatprep.subr.bf16.mxu0 0
        %660 = vmatpush1.bf16.msra.mxu0 0
        %661 = vmatprep.subr.bf16.mxu0 0
        %662 = vmatpush1.bf16.msra.mxu0 0
        %663 = vmatprep.subr.bf16.mxu0 0
        %664 = vmatpush1.bf16.msra.mxu0 0
        %665 = vmatprep.subr.bf16.mxu0 0
        %666 = vmatpush1.bf16.msra.mxu0 0
        %667 = vmatprep.subr.bf16.mxu0 0
        %668 = vmatpush1.bf16.msra.mxu0 0
        %669 = vmatprep.subr.bf16.mxu0 0
        %670 = vmatpush1.bf16.msra.mxu0 0
        %671 = vmatprep.subr.bf16.mxu0 0
        %672 = vmatpush1.bf16.msra.mxu0 0
        %673 = vmatprep.subr.bf16.mxu0 0
        %674 = vmatpush1.bf16.msra.mxu0 0
        %675 = vmatprep.subr.bf16.mxu0 0
        %676 = vmatpush1.bf16.msra.mxu0 0
        %677 = vmatprep.subr.bf16.mxu0 0
        %678 = vmatpush1.bf16.msra.mxu0 0
        %679 = vmatprep.subr.bf16.mxu0 0
        %680 = vmatpush1.bf16.msra.mxu0 0
        %681 = vmatprep.subr.bf16.mxu0 0
        %682 = vmatpush1.bf16.msra.mxu0 0
        %683 = vmatprep.subr.bf16.mxu0 0
        %684 = vmatpush1.bf16.msra.mxu0 0
        %685 = vmatprep.subr.bf16.mxu0 0
        %686 = vmatpush1.bf16.msra.mxu0 0
        %687 = vmatprep.subr.bf16.mxu0 0
        %688 = vmatpush1.bf16.msra.mxu0 0
        %689 = vmatprep.mubr.bf16.mxu0 0
        %690 = vmatmul.mubr.bf16.gmra.mrb[0].mxu0 %v651
        %v691 = vpop.f32.mrb[0].mxu0
        %v692 = vadd.f32 0.0, %v691
        %v693 = vpop.f32.mrb[0].mxu0
        %v694 = vpop.f32.mrb[0].mxu0
        %v695 = vpop.f32.mrb[0].mxu0
        %696 = vdwg.mxu0
        %697 = vst.msk [vmem:[#allocation2] sm:$0xff] %vm588, %v692
        %s698 = scalar_lea.vmem %s3, 16
        %v699 = vld [vmem:[%s698] sm:$0xf]
        %v700 = vld [vmem:[%s698 + $0x4] sm:$0xf]
        %v701 = vld [vmem:[%s698 + $0x8] sm:$0xf]
        %v702 = vld [vmem:[%s698 + $0xc] sm:$0xf]
        %s703 = scalar_lea.vmem [#allocation3], 1
        %v704 = vld [vmem:[%s703] sm:$0x1]
        %v706 = vlaneseq
        %v707 = vshrl.u32 %v706, 7
        %v708 = vsub.s32 0, %v707
        %v709 = vrot.slane %v704, %v708
        %v715 = vunpack.c.l.b16 %v699
        %v716 = vunpack.c.l.b16 %v700
        %v717 = vunpack.c.l.b16 %v701
        %v718 = vunpack.c.l.b16 %v702
        %v719 = vpack.c.b16 %v716, %v715
        %v720 = vpack.c.b16 %v718, %v717
        %723 = vmatprep.subr.bf16.mxu0 0
        %724 = vmatpush1.bf16.msra.mxu0 %v719
        %725 = vmatprep.subr.bf16.mxu0 0
        %726 = vmatpush1.bf16.msra.mxu0 %v720
        %727 = vmatprep.subr.bf16.mxu0 0
        %728 = vmatpush1.bf16.msra.mxu0 0
        %729 = vmatprep.subr.bf16.mxu0 0
        %730 = vmatpush1.bf16.msra.mxu0 0
        %731 = vmatprep.subr.bf16.mxu0 0
        %732 = vmatpush1.bf16.msra.mxu0 0
        %733 = vmatprep.subr.bf16.mxu0 0
        %734 = vmatpush1.bf16.msra.mxu0 0
        %735 = vmatprep.subr.bf16.mxu0 0
        %736 = vmatpush1.bf16.msra.mxu0 0
        %737 = vmatprep.subr.bf16.mxu0 0
        %738 = vmatpush1.bf16.msra.mxu0 0
        %739 = vmatprep.subr.bf16.mxu0 0
        %740 = vmatpush1.bf16.msra.mxu0 0
        %741 = vmatprep.subr.bf16.mxu0 0
        %742 = vmatpush1.bf16.msra.mxu0 0
        %743 = vmatprep.subr.bf16.mxu0 0
        %744 = vmatpush1.bf16.msra.mxu0 0
        %745 = vmatprep.subr.bf16.mxu0 0
        %746 = vmatpush1.bf16.msra.mxu0 0
        %747 = vmatprep.subr.bf16.mxu0 0
        %748 = vmatpush1.bf16.msra.mxu0 0
        %749 = vmatprep.subr.bf16.mxu0 0
        %750 = vmatpush1.bf16.msra.mxu0 0
        %751 = vmatprep.subr.bf16.mxu0 0
        %752 = vmatpush1.bf16.msra.mxu0 0
        %753 = vmatprep.subr.bf16.mxu0 0
        %754 = vmatpush1.bf16.msra.mxu0 0
        %755 = vmatprep.mubr.bf16.mxu0 0
        %756 = vmatmul.mubr.bf16.gmra.mrb[0].mxu0 %v536
        %v757 = vpop.f32.mrb[0].mxu0
        %v758 = vadd.f32 %v709, %v757
        %v759 = vpop.f32.mrb[0].mxu0
        %v760 = vpop.f32.mrb[0].mxu0
        %v761 = vpop.f32.mrb[0].mxu0
        %762 = vdwg.mxu0
        %v763 = vpack.c.bf16 %v758, %v758
        %765 = vrot.lane.b32.xlu0 %v763, 112
        %v766 = vpop.permute.xlu0 %765
        %v768 = vsel %vm588, %v763, 0
        %v771 = vsel %vm588, %v766, 0
        %773 = vmatprep.subr.bf16.mxu0 0
        %774 = vmatpush1.bf16.xpose.msra.mxu0 %v771
        %775 = vmatprep.subr.bf16.mxu0 0
        %776 = vmatpush1.bf16.xpose.msra.mxu0 0
        %777 = vmatprep.subr.bf16.mxu0 0
        %778 = vmatpush1.bf16.xpose.msra.mxu0 0
        %779 = vmatprep.subr.bf16.mxu0 0
        %780 = vmatpush1.bf16.xpose.msra.mxu0 0
        %781 = vmatprep.subr.bf16.mxu0 0
        %782 = vmatpush1.bf16.xpose.msra.mxu0 0
        %783 = vmatprep.subr.bf16.mxu0 0
        %784 = vmatpush1.bf16.xpose.msra.mxu0 0
        %785 = vmatprep.subr.bf16.mxu0 0
        %786 = vmatpush1.bf16.xpose.msra.mxu0 0
        %787 = vmatprep.subr.bf16.mxu0 0
        %788 = vmatpush1.bf16.xpose.msra.mxu0 0
        %789 = vmatprep.subr.bf16.mxu0 0
        %790 = vmatpush1.bf16.xpose.msra.mxu0 0
        %791 = vmatprep.subr.bf16.mxu0 0
        %792 = vmatpush1.bf16.xpose.msra.mxu0 0
        %793 = vmatprep.subr.bf16.mxu0 0
        %794 = vmatpush1.bf16.xpose.msra.mxu0 0
        %795 = vmatprep.subr.bf16.mxu0 0
        %796 = vmatpush1.bf16.xpose.msra.mxu0 0
        %797 = vmatprep.subr.bf16.mxu0 0
        %798 = vmatpush1.bf16.xpose.msra.mxu0 0
        %799 = vmatprep.subr.bf16.mxu0 0
        %800 = vmatpush1.bf16.xpose.msra.mxu0 0
        %801 = vmatprep.subr.bf16.mxu0 0
        %802 = vmatpush1.bf16.xpose.msra.mxu0 0
        %803 = vmatprep.subr.bf16.mxu0 0
        %804 = vmatpush1.bf16.xpose.msra.mxu0 0
        %805 = vmatprep.mubr.bf16.mxu0 0
        %806 = vmatmul.mubr.bf16.gmra.mrb[0].mxu0 %v768
        %v807 = vpop.f32.mrb[0].mxu0
        %v808 = vadd.f32 %v583, %v807
        %v809 = vpop.f32.mrb[0].mxu0
        %v810 = vpop.f32.mrb[0].mxu0
        %v811 = vpop.f32.mrb[0].mxu0
        %812 = vdwg.mxu0
        %v813 = vsel %vm635, %v808, -inf
        %814 = vmax.xlane.f32.xlu0 %v813
        %v815 = vpop.xlane.xlu0 %814
        %v816 = vsub.f32 %v808, %v815
        %v817 = vmul.f32 %v816, 1.442695
        %v818 = vpow.pop %v817
        %v819 = vsel %vm635, %v818, 0.0
        %820 = vadd.xlane.f32.xlu0 %v819
        %v821 = vpop.xlane.xlu0 %820
        %v822 = vrcp.pop %v821
        %v823 = vmul.f32 %v818, %v822
        %v824 = vpack.c.bf16 %v823, %v823
        %825 = vrot.lane.b32.xlu0 %v763, 96
        %v826 = vpop.permute.xlu0 %825
        %v828 = vsel %vm635, %v824, 0
        %v831 = vsel %vm653, %v826, 0
        %833 = vmatprep.subr.bf16.mxu0 0
        %834 = vmatpush1.bf16.msra.mxu0 %v831
        %835 = vmatprep.subr.bf16.mxu0 0
        %836 = vmatpush1.bf16.msra.mxu0 0
        %837 = vmatprep.subr.bf16.mxu0 0
        %838 = vmatpush1.bf16.msra.mxu0 0
        %839 = vmatprep.subr.bf16.mxu0 0
        %840 = vmatpush1.bf16.msra.mxu0 0
        %841 = vmatprep.subr.bf16.mxu0 0
        %842 = vmatpush1.bf16.msra.mxu0 0
        %843 = vmatprep.subr.bf16.mxu0 0
        %844 = vmatpush1.bf16.msra.mxu0 0
        %845 = vmatprep.subr.bf16.mxu0 0
        %846 = vmatpush1.bf16.msra.mxu0 0
        %847 = vmatprep.subr.bf16.mxu0 0
        %848 = vmatpush1.bf16.msra.mxu0 0
        %849 = vmatprep.subr.bf16.mxu0 0
        %850 = vmatpush1.bf16.msra.mxu0 0
        %851 = vmatprep.subr.bf16.mxu0 0
        %852 = vmatpush1.bf16.msra.mxu0 0
        %853 = vmatprep.subr.bf16.mxu0 0
        %854 = vmatpush1.bf16.msra.mxu0 0
        %855 = vmatprep.subr.bf16.mxu0 0
        %856 = vmatpush1.bf16.msra.mxu0 0
        %857 = vmatprep.subr.bf16.mxu0 0
        %858 = vmatpush1.bf16.msra.mxu0 0
        %859 = vmatprep.subr.bf16.mxu0 0
        %860 = vmatpush1.bf16.msra.mxu0 0
        %861 = vmatprep.subr.bf16.mxu0 0
        %862 = vmatpush1.bf16.msra.mxu0 0
        %863 = vmatprep.subr.bf16.mxu0 0
        %864 = vmatpush1.bf16.msra.mxu0 0
        %865 = vmatprep.mubr.bf16.mxu0 0
        %866 = vmatmul.mubr.bf16.gmra.mrb[0].mxu0 %v828
        %v867 = vpop.f32.mrb[0].mxu0
        %v868 = vadd.f32 0.0, %v867
        %v869 = vpop.f32.mrb[0].mxu0
        %v870 = vpop.f32.mrb[0].mxu0
        %v871 = vpop.f32.mrb[0].mxu0
        %872 = vdwg.mxu0
        %874 = vrot.lane.b32.xlu0 %v868, 16
        %v875 = vpop.permute.xlu0 %874
        %vm877 = vcmask 261248
        %878 = vst.msk [vmem:[#allocation2] sm:$0xff] %vm877, %v875
        %v879 = vld [vmem:[#allocation2] sm:$0xff]
        %v880 = vpack.c.bf16 %v879, %v879
        %v881 = vld [vmem:[%s5] sm:$0xf]
        %v882 = vld [vmem:[%s5 + $0x4] sm:$0xf]
        %v883 = vld [vmem:[%s5 + $0x8] sm:$0xf]
        %v884 = vld [vmem:[%s5 + $0xc] sm:$0xf]
        %v885 = vld [vmem:[#allocation6] sm:$0x1]
        %v887 = vlaneseq
        %v888 = vshrl.u32 %v887, 7
        %v889 = vsub.s32 0, %v888
        %v890 = vrot.slane %v885, %v889
        %v896 = vunpack.c.l.b16 %v881
        %v897 = vunpack.c.l.b16 %v882
        %v898 = vunpack.c.l.b16 %v883
        %v899 = vunpack.c.l.b16 %v884
        %v900 = vpack.c.b16 %v897, %v896
        %v901 = vpack.c.b16 %v899, %v898
        %v905 = vsel %vm534, %v880, 0
        %907 = vmatprep.subr.bf16.mxu0 0
        %908 = vmatpush1.bf16.msra.mxu0 %v900
        %909 = vmatprep.subr.bf16.mxu0 0
        %910 = vmatpush1.bf16.msra.mxu0 %v901
        %911 = vmatprep.subr.bf16.mxu0 0
        %912 = vmatpush1.bf16.msra.mxu0 0
        %913 = vmatprep.subr.bf16.mxu0 0
        %914 = vmatpush1.bf16.msra.mxu0 0
        %915 = vmatprep.subr.bf16.mxu0 0
        %916 = vmatpush1.bf16.msra.mxu0 0
        %917 = vmatprep.subr.bf16.mxu0 0
        %918 = vmatpush1.bf16.msra.mxu0 0
        %919 = vmatprep.subr.bf16.mxu0 0
        %920 = vmatpush1.bf16.msra.mxu0 0
        %921 = vmatprep.subr.bf16.mxu0 0
        %922 = vmatpush1.bf16.msra.mxu0 0
        %923 = vmatprep.subr.bf16.mxu0 0
        %924 = vmatpush1.bf16.msra.mxu0 0
        %925 = vmatprep.subr.bf16.mxu0 0
        %926 = vmatpush1.bf16.msra.mxu0 0
        %927 = vmatprep.subr.bf16.mxu0 0
        %928 = vmatpush1.bf16.msra.mxu0 0
        %929 = vmatprep.subr.bf16.mxu0 0
        %930 = vmatpush1.bf16.msra.mxu0 0
        %931 = vmatprep.subr.bf16.mxu0 0
        %932 = vmatpush1.bf16.msra.mxu0 0
        %933 = vmatprep.subr.bf16.mxu0 0
        %934 = vmatpush1.bf16.msra.mxu0 0
        %935 = vmatprep.subr.bf16.mxu0 0
        %936 = vmatpush1.bf16.msra.mxu0 0
        %937 = vmatprep.subr.bf16.mxu0 0
        %938 = vmatpush1.bf16.msra.mxu0 0
        %939 = vmatprep.mubr.bf16.mxu0 0
        %940 = vmatmul.mubr.bf16.gmra.mrb[0].mxu0 %v905
        %v941 = vpop.f32.mrb[0].mxu0
        %v942 = vadd.f32 %v890, %v941
        %v943 = vpop.f32.mrb[0].mxu0
        %v944 = vpop.f32.mrb[0].mxu0
        %v945 = vpop.f32.mrb[0].mxu0
        %946 = vdwg.mxu0
        %v947 = vadd.f32 %v473, %v942
        %949 = vset.pattern.permute.xlu0 0
        %950 = vperm.xlu0 %949, %v493
        %v951 = vpop.permute.xlu0 %950
        %v953 = vmul.f32 %v947, %v951
        %v954 = vsel %vm534, %v953, 0.0
        %955 = vadd.xlane.f32.xlu0 %v954
        %v956 = vpop.xlane.xlu0 %955
        %v957 = vrcp.pop 32.0
        %v958 = vmul.f32 %v956, %v957
        %v959 = vsub.f32 %v953, %v958
        %v960 = vmul.f32 %v959, %v959
        %v961 = vsel %vm534, %v960, 0.0
        %962 = vadd.xlane.f32.xlu0 %v961
        %v963 = vpop.xlane.xlu0 %962
        %v964 = vmul.f32 %v963, %v957
        %v965 = vlaneseq
        %v966 = vshrl.u32 %v965, 7
        %v967 = vsub.s32 0, %v966
        %v968 = vrot.slane %v509, %v967
        %v969 = vmul.f32 %v968, %v959
        %v970 = vadd.f32 %v964, 1e-05
        %v971 = vrsqrt.pop %v970
        %v972 = vmul.f32 %v969, %v971
        %974 = vrot.lane.b32.xlu0 %v968, 96
        %v975 = vpop.permute.xlu0 %974
        %v977 = vadd.f32 %v972, %v975
        %v978 = vpack.c.bf16 %v977, %v977
        %v979 = vld [vmem:[%s7] sm:$0xf]
        %v980 = vld [vmem:[%s7 + $0x4] sm:$0xf]
        %v981 = vld [vmem:[%s7 + $0x8] sm:$0xf]
        %v982 = vld [vmem:[%s7 + $0xc] sm:$0xf]
        %v983 = vld [vmem:[#allocation8] sm:$0x1]
        %v985 = vlaneseq
        %v986 = vshrl.u32 %v985, 7
        %v987 = vsub.s32 0, %v986
        %v988 = vrot.slane %v983, %v987
        %v994 = vunpack.c.l.b16 %v979
        %v995 = vunpack.c.l.b16 %v980
        %v996 = vunpack.c.l.b16 %v981
        %v997 = vunpack.c.l.b16 %v982
        %v998 = vpack.c.b16 %v995, %v994
        %v999 = vpack.c.b16 %v997, %v996
        %v1003 = vsel %vm534, %v978, 0
        %1005 = vmatprep.subr.bf16.mxu0 0
        %1006 = vmatpush1.bf16.msra.mxu0 %v998
        %1007 = vmatprep.subr.bf16.mxu0 0
        %1008 = vmatpush1.bf16.msra.mxu0 %v999
        %1009 = vmatprep.subr.bf16.mxu0 0
        %1010 = vmatpush1.bf16.msra.mxu0 0
        %1011 = vmatprep.subr.bf16.mxu0 0
        %1012 = vmatpush1.bf16.msra.mxu0 0
        %1013 = vmatprep.subr.bf16.mxu0 0
        %1014 = vmatpush1.bf16.msra.mxu0 0
        %1015 = vmatprep.subr.bf16.mxu0 0
        %1016 = vmatpush1.bf16.msra.mxu0 0
        %1017 = vmatprep.subr.bf16.mxu0 0
        %1018 = vmatpush1.bf16.msra.mxu0 0
        %1019 = vmatprep.subr.bf16.mxu0 0
        %1020 = vmatpush1.bf16.msra.mxu0 0
        %1021 = vmatprep.subr.bf16.mxu0 0
        %1022 = vmatpush1.bf16.msra.mxu0 0
        %1023 = vmatprep.subr.bf16.mxu0 0
        %1024 = vmatpush1.bf16.msra.mxu0 0
        %1025 = vmatprep.subr.bf16.mxu0 0
        %1026 = vmatpush1.bf16.msra.mxu0 0
        %1027 = vmatprep.subr.bf16.mxu0 0
        %1028 = vmatpush1.bf16.msra.mxu0 0
        %1029 = vmatprep.subr.bf16.mxu0 0
        %1030 = vmatpush1.bf16.msra.mxu0 0
        %1031 = vmatprep.subr.bf16.mxu0 0
        %1032 = vmatpush1.bf16.msra.mxu0 0
        %1033 = vmatprep.subr.bf16.mxu0 0
        %1034 = vmatpush1.bf16.msra.mxu0 0
        %1035 = vmatprep.subr.bf16.mxu0 0
        %1036 = vmatpush1.bf16.msra.mxu0 0
        %1037 = vmatprep.mubr.bf16.mxu0 0
        %1038 = vmatmul.mubr.bf16.gmra.mrb[0].mxu0 %v1003
        %v1039 = vpop.f32.mrb[0].mxu0
        %v1040 = vadd.f32 %v988, %v1039
        %v1041 = vpop.f32.mrb[0].mxu0
        %v1042 = vpop.f32.mrb[0].mxu0
        %v1043 = vpop.f32.mrb[0].mxu0
        %1044 = vdwg.mxu0
        %v1045 = vmax.f32 %v1040, 0.0
        %v1046 = vpack.c.bf16 %v1045, %v1045
        %v1047 = vld [vmem:[%s9] sm:$0xf]
        %v1048 = vld [vmem:[%s9 + $0x4] sm:$0xf]
        %v1049 = vld [vmem:[%s9 + $0x8] sm:$0xf]
        %v1050 = vld [vmem:[%s9 + $0xc] sm:$0xf]
        %v1051 = vld [vmem:[%s9 + $0x10] sm:$0xf]
        %v1052 = vld [vmem:[%s9 + $0x14] sm:$0xf]
        %v1053 = vld [vmem:[%s9 + $0x18] sm:$0xf]
        %v1054 = vld [vmem:[%s9 + $0x1c] sm:$0xf]
        %v1055 = vld [vmem:[#allocation9] sm:$0x1]
        %v1057 = vlaneseq
        %v1058 = vshrl.u32 %v1057, 7
        %v1059 = vsub.s32 0, %v1058
        %v1060 = vrot.slane %v1055, %v1059
        %v1070 = vunpack.c.l.b16 %v1047
        %v1071 = vunpack.c.l.b16 %v1048
        %v1072 = vunpack.c.l.b16 %v1049
        %v1073 = vunpack.c.l.b16 %v1050
        %v1074 = vunpack.c.l.b16 %v1051
        %v1075 = vunpack.c.l.b16 %v1052
        %v1076 = vunpack.c.l.b16 %v1053
        %v1077 = vunpack.c.l.b16 %v1054
        %v1078 = vpack.c.b16 %v1071, %v1070
        %v1079 = vpack.c.b16 %v1073, %v1072
        %v1080 = vpack.c.b16 %v1075, %v1074
        %v1081 = vpack.c.b16 %v1077, %v1076
        %vm1086 = vcmask 523264
        %v1088 = vsel %vm1086, %v1046, 0
        %1090 = vmatprep.subr.bf16.mxu0 0
        %1091 = vmatpush1.bf16.msra.mxu0 %v1078
        %1092 = vmatprep.subr.bf16.mxu0 0
        %1093 = vmatpush1.bf16.msra.mxu0 %v1079
        %1094 = vmatprep.subr.bf16.mxu0 0
        %1095 = vmatpush1.bf16.msra.mxu0 %v1080
        %1096 = vmatprep.subr.bf16.mxu0 0
        %1097 = vmatpush1.bf16.msra.mxu0 %v1081
        %1098 = vmatprep.subr.bf16.mxu0 0
        %1099 = vmatpush1.bf16.msra.mxu0 0
        %1100 = vmatprep.subr.bf16.mxu0 0
        %1101 = vmatpush1.bf16.msra.mxu0 0
        %1102 = vmatprep.subr.bf16.mxu0 0
        %1103 = vmatpush1.bf16.msra.mxu0 0
        %1104 = vmatprep.subr.bf16.mxu0 0
        %1105 = vmatpush1.bf16.msra.mxu0 0
        %1106 = vmatprep.subr.bf16.mxu0 0
        %1107 = vmatpush1.bf16.msra.mxu0 0
        %1108 = vmatprep.subr.bf16.mxu0 0
        %1109 = vmatpush1.bf16.msra.mxu0 0
        %1110 = vmatprep.subr.bf16.mxu0 0
        %1111 = vmatpush1.bf16.msra.mxu0 0
        %1112 = vmatprep.subr.bf16.mxu0 0
        %1113 = vmatpush1.bf16.msra.mxu0 0
        %1114 = vmatprep.subr.bf16.mxu0 0
        %1115 = vmatpush1.bf16.msra.mxu0 0
        %1116 = vmatprep.subr.bf16.mxu0 0
        %1117 = vmatpush1.bf16.msra.mxu0 0
        %1118 = vmatprep.subr.bf16.mxu0 0
        %1119 = vmatpush1.bf16.msra.mxu0 0
        %1120 = vmatprep.subr.bf16.mxu0 0
        %1121 = vmatpush1.bf16.msra.mxu0 0
        %1122 = vmatprep.mubr.bf16.mxu0 0
        %1123 = vmatmul.mubr.bf16.gmra.mrb[0].mxu0 %v1088
        %v1124 = vpop.f32.mrb[0].mxu0
        %v1125 = vadd.f32 %v1060, %v1124
        %v1126 = vpop.f32.mrb[0].mxu0
        %v1127 = vpop.f32.mrb[0].mxu0
        %v1128 = vpop.f32.mrb[0].mxu0
        %1129 = vdwg.mxu0
        %v1130 = vadd.f32 %v977, %v1125
        %v1131 = vmul.f32 %v1130, %v951
        %v1132 = vsel %vm534, %v1131, 0.0
        %1133 = vadd.xlane.f32.xlu0 %v1132
        %v1134 = vpop.xlane.xlu0 %1133
        %v1135 = vmul.f32 %v1134, %v957
        %v1136 = vsub.f32 %v1131, %v1135
        %v1137 = vmul.f32 %v1136, %v1136
        %v1138 = vsel %vm534, %v1137, 0.0
        %1139 = vadd.xlane.f32.xlu0 %v1138
        %v1140 = vpop.xlane.xlu0 %1139
        %v1141 = vmul.f32 %v1140, %v957
        %1143 = vrot.lane.b32.xlu0 %v1136, 64
        %v1144 = vpop.permute.xlu0 %1143
        %v1146 = vmul.f32 %v968, %v1144
        %v1147 = vadd.f32 %v1141, 1e-05
        %v1148 = vrsqrt.pop %v1147
        %v1149 = vmul.f32 %v1146, %v1148
        %v1150 = vadd.f32 %v1149, %v975
        %v1151 = vld [vmem:[%s471 + $0x1] sm:$0x1]
        %v1152 = vpack.c.bf16 %v1150, %v1150
        %s1153 = scalar_lea.vmem %s3, 32
        %v1154 = vld [vmem:[%s1153] sm:$0xf]
        %v1155 = vld [vmem:[%s1153 + $0x4] sm:$0xf]
        %v1156 = vld [vmem:[%s1153 + $0x8] sm:$0xf]
        %v1157 = vld [vmem:[%s1153 + $0xc] sm:$0xf]
        %s1158 = scalar_lea.vmem [#allocation3], 2
        %v1159 = vld [vmem:[%s1158] sm:$0x1]
        %v1161 = vlaneseq
        %v1162 = vshrl.u32 %v1161, 7
        %v1163 = vsub.s32 0, %v1162
        %v1164 = vrot.slane %v1159, %v1163
        %1167 = vrot.lane.b32.xlu0 %v1152, 64
        %v1168 = vpop.permute.xlu0 %1167
        %v1173 = vunpack.c.l.b16 %v1154
        %v1174 = vunpack.c.l.b16 %v1155
        %v1175 = vunpack.c.l.b16 %v1156
        %v1176 = vunpack.c.l.b16 %v1157
        %v1177 = vpack.c.b16 %v1174, %v1173
        %v1178 = vpack.c.b16 %v1176, %v1175
        %v1182 = vsel %vm534, %v1168, 0
        %1184 = vmatprep.subr.bf16.mxu0 0
        %1185 = vmatpush1.bf16.msra.mxu0 %v1177
        %1186 = vmatprep.subr.bf16.mxu0 0
        %1187 = vmatpush1.bf16.msra.mxu0 %v1178
        %1188 = vmatprep.subr.bf16.mxu0 0
        %1189 = vmatpush1.bf16.msra.mxu0 0
        %1190 = vmatprep.subr.bf16.mxu0 0
        %1191 = vmatpush1.bf16.msra.mxu0 0
        %1192 = vmatprep.subr.bf16.mxu0 0
        %1193 = vmatpush1.bf16.msra.mxu0 0
        %1194 = vmatprep.subr.bf16.mxu0 0
        %1195 = vmatpush1.bf16.msra.mxu0 0
        %1196 = vmatprep.subr.bf16.mxu0 0
        %1197 = vmatpush1.bf16.msra.mxu0 0
        %1198 = vmatprep.subr.bf16.mxu0 0
        %1199 = vmatpush1.bf16.msra.mxu0 0
        %1200 = vmatprep.subr.bf16.mxu0 0
        %1201 = vmatpush1.bf16.msra.mxu0 0
        %1202 = vmatprep.subr.bf16.mxu0 0
        %1203 = vmatpush1.bf16.msra.mxu0 0
        %1204 = vmatprep.subr.bf16.mxu0 0
        %1205 = vmatpush1.bf16.msra.mxu0 0
        %1206 = vmatprep.subr.bf16.mxu0 0
        %1207 = vmatpush1.bf16.msra.mxu0 0
        %1208 = vmatprep.subr.bf16.mxu0 0
        %1209 = vmatpush1.bf16.msra.mxu0 0
        %1210 = vmatprep.subr.bf16.mxu0 0
        %1211 = vmatpush1.bf16.msra.mxu0 0
        %1212 = vmatprep.subr.bf16.mxu0 0
        %1213 = vmatpush1.bf16.msra.mxu0 0
        %1214 = vmatprep.subr.bf16.mxu0 0
        %1215 = vmatpush1.bf16.msra.mxu0 0
        %1216 = vmatprep.mubr.bf16.mxu0 0
        %1217 = vmatmul.mubr.bf16.gmra.mrb[0].mxu0 %v1182
        %v1218 = vpop.f32.mrb[0].mxu0
        %v1219 = vadd.f32 %v1164, %v1218
        %v1220 = vpop.f32.mrb[0].mxu0
        %v1221 = vpop.f32.mrb[0].mxu0
        %v1222 = vpop.f32.mrb[0].mxu0
        %1223 = vdwg.mxu0
        %v1224 = vpack.c.bf16 %v1219, %v1219
        %1226 = vrot.lane.b32.xlu0 %v1224, 112
        %v1227 = vpop.permute.xlu0 %1226
        %v1229 = vsel %vm588, %v1224, 0
        %v1232 = vsel %vm588, %v1227, 0
        %1234 = vmatprep.subr.bf16.mxu0 0
        %1235 = vmatpush1.bf16.xpose.msra.mxu0 %v1232
        %1236 = vmatprep.subr.bf16.mxu0 0
        %1237 = vmatpush1.bf16.xpose.msra.mxu0 0
        %1238 = vmatprep.subr.bf16.mxu0 0
        %1239 = vmatpush1.bf16.xpose.msra.mxu0 0
        %1240 = vmatprep.subr.bf16.mxu0 0
        %1241 = vmatpush1.bf16.xpose.msra.mxu0 0
        %1242 = vmatprep.subr.bf16.mxu0 0
        %1243 = vmatpush1.bf16.xpose.msra.mxu0 0
        %1244 = vmatprep.subr.bf16.mxu0 0
        %1245 = vmatpush1.bf16.xpose.msra.mxu0 0
        %1246 = vmatprep.subr.bf16.mxu0 0
        %1247 = vmatpush1.bf16.xpose.msra.mxu0 0
        %1248 = vmatprep.subr.bf16.mxu0 0
        %1249 = vmatpush1.bf16.xpose.msra.mxu0 0
        %1250 = vmatprep.subr.bf16.mxu0 0
        %1251 = vmatpush1.bf16.xpose.msra.mxu0 0
        %1252 = vmatprep.subr.bf16.mxu0 0
        %1253 = vmatpush1.bf16.xpose.msra.mxu0 0
        %1254 = vmatprep.subr.bf16.mxu0 0
        %1255 = vmatpush1.bf16.xpose.msra.mxu0 0
        %1256 = vmatprep.subr.bf16.mxu0 0
        %1257 = vmatpush1.bf16.xpose.msra.mxu0 0
        %1258 = vmatprep.subr.bf16.mxu0 0
        %1259 = vmatpush1.bf16.xpose.msra.mxu0 0
        %1260 = vmatprep.subr.bf16.mxu0 0
        %1261 = vmatpush1.bf16.xpose.msra.mxu0 0
        %1262 = vmatprep.subr.bf16.mxu0 0
        %1263 = vmatpush1.bf16.xpose.msra.mxu0 0
        %1264 = vmatprep.subr.bf16.mxu0 0
        %1265 = vmatpush1.bf16.xpose.msra.mxu0 0
        %1266 = vmatprep.mubr.bf16.mxu0 0
        %1267 = vmatmul.mubr.bf16.gmra.mrb[0].mxu0 %v1229
        %v1268 = vpop.f32.mrb[0].mxu0
        %v1269 = vadd.f32 %v583, %v1268
        %v1270 = vpop.f32.mrb[0].mxu0
        %v1271 = vpop.f32.mrb[0].mxu0
        %v1272 = vpop.f32.mrb[0].mxu0
        %1273 = vdwg.mxu0
        %v1274 = vsel %vm635, %v1269, -inf
        %1275 = vmax.xlane.f32.xlu0 %v1274
        %v1276 = vpop.xlane.xlu0 %1275
        %v1277 = vsub.f32 %v1269, %v1276
        %v1278 = vmul.f32 %v1277, 1.442695
        %v1279 = vpow.pop %v1278
        %v1280 = vsel %vm635, %v1279, 0.0
        %1281 = vadd.xlane.f32.xlu0 %v1280
        %v1282 = vpop.xlane.xlu0 %1281
        %v1283 = vrcp.pop %v1282
        %v1284 = vmul.f32 %v1279, %v1283
        %v1285 = vpack.c.bf16 %v1284, %v1284
        %1286 = vrot.lane.b32.xlu0 %v1224, 96
        %v1287 = vpop.permute.xlu0 %1286
        %v1289 = vsel %vm635, %v1285, 0
        %v1292 = vsel %vm653, %v1287, 0
        %1294 = vmatprep.subr.bf16.mxu0 0
        %1295 = vmatpush1.bf16.msra.mxu0 %v1292
        %1296 = vmatprep.subr.bf16.mxu0 0
        %1297 = vmatpush1.bf16.msra.mxu0 0
        %1298 = vmatprep.subr.bf16.mxu0 0
        %1299 = vmatpush1.bf16.msra.mxu0 0
        %1300 = vmatprep.subr.bf16.mxu0 0
        %1301 = vmatpush1.bf16.msra.mxu0 0
        %1302 = vmatprep.subr.bf16.mxu0 0
        %1303 = vmatpush1.bf16.msra.mxu0 0
        %1304 = vmatprep.subr.bf16.mxu0 0
        %1305 = vmatpush1.bf16.msra.mxu0 0
        %1306 = vmatprep.subr.bf16.mxu0 0
        %1307 = vmatpush1.bf16.msra.mxu0 0
        %1308 = vmatprep.subr.bf16.mxu0 0
        %1309 = vmatpush1.bf16.msra.mxu0 0
        %1310 = vmatprep.subr.bf16.mxu0 0
        %1311 = vmatpush1.bf16.msra.mxu0 0
        %1312 = vmatprep.subr.bf16.mxu0 0
        %1313 = vmatpush1.bf16.msra.mxu0 0
        %1314 = vmatprep.subr.bf16.mxu0 0
        %1315 = vmatpush1.bf16.msra.mxu0 0
        %1316 = vmatprep.subr.bf16.mxu0 0
        %1317 = vmatpush1.bf16.msra.mxu0 0
        %1318 = vmatprep.subr.bf16.mxu0 0
        %1319 = vmatpush1.bf16.msra.mxu0 0
        %1320 = vmatprep.subr.bf16.mxu0 0
        %1321 = vmatpush1.bf16.msra.mxu0 0
        %1322 = vmatprep.subr.bf16.mxu0 0
        %1323 = vmatpush1.bf16.msra.mxu0 0
        %1324 = vmatprep.subr.bf16.mxu0 0
        %1325 = vmatpush1.bf16.msra.mxu0 0
        %1326 = vmatprep.mubr.bf16.mxu0 0
        %1327 = vmatmul.mubr.bf16.gmra.mrb[0].mxu0 %v1289
        %v1328 = vpop.f32.mrb[0].mxu0
        %v1329 = vadd.f32 0.0, %v1328
        %v1330 = vpop.f32.mrb[0].mxu0
        %v1331 = vpop.f32.mrb[0].mxu0
        %v1332 = vpop.f32.mrb[0].mxu0
        %1333 = vdwg.mxu0
        %1334 = vst.msk [vmem:[#allocation2] sm:$0xff] %vm588, %v1329
        %s1335 = scalar_lea.vmem %s3, 48
        %v1336 = vld [vmem:[%s1335] sm:$0xf]
        %v1337 = vld [vmem:[%s1335 + $0x4] sm:$0xf]
        %v1338 = vld [vmem:[%s1335 + $0x8] sm:$0xf]
        %v1339 = vld [vmem:[%s1335 + $0xc] sm:$0xf]
        %s1340 = scalar_lea.vmem [#allocation3], 3
        %v1341 = vld [vmem:[%s1340] sm:$0x1]
        %v1343 = vlaneseq
        %v1344 = vshrl.u32 %v1343, 7
        %v1345 = vsub.s32 0, %v1344
        %v1346 = vrot.slane %v1341, %v1345
        %v1352 = vunpack.c.l.b16 %v1336
        %v1353 = vunpack.c.l.b16 %v1337
        %v1354 = vunpack.c.l.b16 %v1338
        %v1355 = vunpack.c.l.b16 %v1339
        %v1356 = vpack.c.b16 %v1353, %v1352
        %v1357 = vpack.c.b16 %v1355, %v1354
        %1360 = vmatprep.subr.bf16.mxu0 0
        %1361 = vmatpush1.bf16.msra.mxu0 %v1356
        %1362 = vmatprep.subr.bf16.mxu0 0
        %1363 = vmatpush1.bf16.msra.mxu0 %v1357
        %1364 = vmatprep.subr.bf16.mxu0 0
        %1365 = vmatpush1.bf16.msra.mxu0 0
        %1366 = vmatprep.subr.bf16.mxu0 0
        %1367 = vmatpush1.bf16.msra.mxu0 0
        %1368 = vmatprep.subr.bf16.mxu0 0
        %1369 = vmatpush1.bf16.msra.mxu0 0
        %1370 = vmatprep.subr.bf16.mxu0 0
        %1371 = vmatpush1.bf16.msra.mxu0 0
        %1372 = vmatprep.subr.bf16.mxu0 0
        %1373 = vmatpush1.bf16.msra.mxu0 0
        %1374 = vmatprep.subr.bf16.mxu0 0
        %1375 = vmatpush1.bf16.msra.mxu0 0
        %1376 = vmatprep.subr.bf16.mxu0 0
        %1377 = vmatpush1.bf16.msra.mxu0 0
        %1378 = vmatprep.subr.bf16.mxu0 0
        %1379 = vmatpush1.bf16.msra.mxu0 0
        %1380 = vmatprep.subr.bf16.mxu0 0
        %1381 = vmatpush1.bf16.msra.mxu0 0
        %1382 = vmatprep.subr.bf16.mxu0 0
        %1383 = vmatpush1.bf16.msra.mxu0 0
        %1384 = vmatprep.subr.bf16.mxu0 0
        %1385 = vmatpush1.bf16.msra.mxu0 0
        %1386 = vmatprep.subr.bf16.mxu0 0
        %1387 = vmatpush1.bf16.msra.mxu0 0
        %1388 = vmatprep.subr.bf16.mxu0 0
        %1389 = vmatpush1.bf16.msra.mxu0 0
        %1390 = vmatprep.subr.bf16.mxu0 0
        %1391 = vmatpush1.bf16.msra.mxu0 0
        %1392 = vmatprep.mubr.bf16.mxu0 0
        %1393 = vmatmul.mubr.bf16.gmra.mrb[0].mxu0 %v1182
        %v1394 = vpop.f32.mrb[0].mxu0
        %v1395 = vadd.f32 %v1346, %v1394
        %v1396 = vpop.f32.mrb[0].mxu0
        %v1397 = vpop.f32.mrb[0].mxu0
        %v1398 = vpop.f32.mrb[0].mxu0
        %1399 = vdwg.mxu0
        %v1400 = vpack.c.bf16 %v1395, %v1395
        %1402 = vrot.lane.b32.xlu0 %v1400, 112
        %v1403 = vpop.permute.xlu0 %1402
        %v1405 = vsel %vm588, %v1400, 0
        %v1408 = vsel %vm588, %v1403, 0
        %1410 = vmatprep.subr.bf16.mxu0 0
        %1411 = vmatpush1.bf16.xpose.msra.mxu0 %v1408
        %1412 = vmatprep.subr.bf16.mxu0 0
        %1413 = vmatpush1.bf16.xpose.msra.mxu0 0
        %1414 = vmatprep.subr.bf16.mxu0 0
        %1415 = vmatpush1.bf16.xpose.msra.mxu0 0
        %1416 = vmatprep.subr.bf16.mxu0 0
        %1417 = vmatpush1.bf16.xpose.msra.mxu0 0
        %1418 = vmatprep.subr.bf16.mxu0 0
        %1419 = vmatpush1.bf16.xpose.msra.mxu0 0
        %1420 = vmatprep.subr.bf16.mxu0 0
        %1421 = vmatpush1.bf16.xpose.msra.mxu0 0
        %1422 = vmatprep.subr.bf16.mxu0 0
        %1423 = vmatpush1.bf16.xpose.msra.mxu0 0
        %1424 = vmatprep.subr.bf16.mxu0 0
        %1425 = vmatpush1.bf16.xpose.msra.mxu0 0
        %1426 = vmatprep.subr.bf16.mxu0 0
        %1427 = vmatpush1.bf16.xpose.msra.mxu0 0
        %1428 = vmatprep.subr.bf16.mxu0 0
        %1429 = vmatpush1.bf16.xpose.msra.mxu0 0
        %1430 = vmatprep.subr.bf16.mxu0 0
        %1431 = vmatpush1.bf16.xpose.msra.mxu0 0
        %1432 = vmatprep.subr.bf16.mxu0 0
        %1433 = vmatpush1.bf16.xpose.msra.mxu0 0
        %1434 = vmatprep.subr.bf16.mxu0 0
        %1435 = vmatpush1.bf16.xpose.msra.mxu0 0
        %1436 = vmatprep.subr.bf16.mxu0 0
        %1437 = vmatpush1.bf16.xpose.msra.mxu0 0
        %1438 = vmatprep.subr.bf16.mxu0 0
        %1439 = vmatpush1.bf16.xpose.msra.mxu0 0
        %1440 = vmatprep.subr.bf16.mxu0 0
        %1441 = vmatpush1.bf16.xpose.msra.mxu0 0
        %1442 = vmatprep.mubr.bf16.mxu0 0
        %1443 = vmatmul.mubr.bf16.gmra.mrb[0].mxu0 %v1405
        %v1444 = vpop.f32.mrb[0].mxu0
        %v1445 = vadd.f32 %v583, %v1444
        %v1446 = vpop.f32.mrb[0].mxu0
        %v1447 = vpop.f32.mrb[0].mxu0
        %v1448 = vpop.f32.mrb[0].mxu0
        %1449 = vdwg.mxu0
        %v1450 = vsel %vm635, %v1445, -inf
        %1451 = vmax.xlane.f32.xlu0 %v1450
        %v1452 = vpop.xlane.xlu0 %1451
        %v1453 = vsub.f32 %v1445, %v1452
        %v1454 = vmul.f32 %v1453, 1.442695
        %v1455 = vpow.pop %v1454
        %v1456 = vsel %vm635, %v1455, 0.0
        %1457 = vadd.xlane.f32.xlu0 %v1456
        %v1458 = vpop.xlane.xlu0 %1457
        %v1459 = vrcp.pop %v1458
        %v1460 = vmul.f32 %v1455, %v1459
        %v1461 = vpack.c.bf16 %v1460, %v1460
        %1462 = vrot.lane.b32.xlu0 %v1400, 96
        %v1463 = vpop.permute.xlu0 %1462
        %v1465 = vsel %vm635, %v1461, 0
        %v1468 = vsel %vm653, %v1463, 0
        %1470 = vmatprep.subr.bf16.mxu0 0
        %1471 = vmatpush1.bf16.msra.mxu0 %v1468
        %1472 = vmatprep.subr.bf16.mxu0 0
        %1473 = vmatpush1.bf16.msra.mxu0 0
        %1474 = vmatprep.subr.bf16.mxu0 0
        %1475 = vmatpush1.bf16.msra.mxu0 0
        %1476 = vmatprep.subr.bf16.mxu0 0
        %1477 = vmatpush1.bf16.msra.mxu0 0
        %1478 = vmatprep.subr.bf16.mxu0 0
        %1479 = vmatpush1.bf16.msra.mxu0 0
        %1480 = vmatprep.subr.bf16.mxu0 0
        %1481 = vmatpush1.bf16.msra.mxu0 0
        %1482 = vmatprep.subr.bf16.mxu0 0
        %1483 = vmatpush1.bf16.msra.mxu0 0
        %1484 = vmatprep.subr.bf16.mxu0 0
        %1485 = vmatpush1.bf16.msra.mxu0 0
        %1486 = vmatprep.subr.bf16.mxu0 0
        %1487 = vmatpush1.bf16.msra.mxu0 0
        %1488 = vmatprep.subr.bf16.mxu0 0
        %1489 = vmatpush1.bf16.msra.mxu0 0
        %1490 = vmatprep.subr.bf16.mxu0 0
        %1491 = vmatpush1.bf16.msra.mxu0 0
        %1492 = vmatprep.subr.bf16.mxu0 0
        %1493 = vmatpush1.bf16.msra.mxu0 0
        %1494 = vmatprep.subr.bf16.mxu0 0
        %1495 = vmatpush1.bf16.msra.mxu0 0
        %1496 = vmatprep.subr.bf16.mxu0 0
        %1497 = vmatpush1.bf16.msra.mxu0 0
        %1498 = vmatprep.subr.bf16.mxu0 0
        %1499 = vmatpush1.bf16.msra.mxu0 0
        %1500 = vmatprep.subr.bf16.mxu0 0
        %1501 = vmatpush1.bf16.msra.mxu0 0
        %1502 = vmatprep.mubr.bf16.mxu0 0
        %1503 = vmatmul.mubr.bf16.gmra.mrb[0].mxu0 %v1465
        %v1504 = vpop.f32.mrb[0].mxu0
        %v1505 = vadd.f32 0.0, %v1504
        %v1506 = vpop.f32.mrb[0].mxu0
        %v1507 = vpop.f32.mrb[0].mxu0
        %v1508 = vpop.f32.mrb[0].mxu0
        %1509 = vdwg.mxu0
        %1511 = vrot.lane.b32.xlu0 %v1505, 16
        %v1512 = vpop.permute.xlu0 %1511
        %1514 = vst.msk [vmem:[#allocation2] sm:$0xff] %vm877, %v1512
        %v1515 = vld [vmem:[#allocation2] sm:$0xff]
        %v1516 = vpack.c.bf16 %v1515, %v1515
        %s1517 = scalar_lea.vmem %s5, 16
        %v1518 = vld [vmem:[%s1517] sm:$0xf]
        %v1519 = vld [vmem:[%s1517 + $0x4] sm:$0xf]
        %v1520 = vld [vmem:[%s1517 + $0x8] sm:$0xf]
        %v1521 = vld [vmem:[%s1517 + $0xc] sm:$0xf]
        %s1522 = scalar_lea.vmem [#allocation6], 1
        %v1523 = vld [vmem:[%s1522] sm:$0x1]
        %v1525 = vlaneseq
        %v1526 = vshrl.u32 %v1525, 7
        %v1527 = vsub.s32 0, %v1526
        %v1528 = vrot.slane %v1523, %v1527
        %v1534 = vunpack.c.l.b16 %v1518
        %v1535 = vunpack.c.l.b16 %v1519
        %v1536 = vunpack.c.l.b16 %v1520
        %v1537 = vunpack.c.l.b16 %v1521
        %v1538 = vpack.c.b16 %v1535, %v1534
        %v1539 = vpack.c.b16 %v1537, %v1536
        %v1543 = vsel %vm534, %v1516, 0
        %1545 = vmatprep.subr.bf16.mxu0 0
        %1546 = vmatpush1.bf16.msra.mxu0 %v1538
        %1547 = vmatprep.subr.bf16.mxu0 0
        %1548 = vmatpush1.bf16.msra.mxu0 %v1539
        %1549 = vmatprep.subr.bf16.mxu0 0
        %1550 = vmatpush1.bf16.msra.mxu0 0
        %1551 = vmatprep.subr.bf16.mxu0 0
        %1552 = vmatpush1.bf16.msra.mxu0 0
        %1553 = vmatprep.subr.bf16.mxu0 0
        %1554 = vmatpush1.bf16.msra.mxu0 0
        %1555 = vmatprep.subr.bf16.mxu0 0
        %1556 = vmatpush1.bf16.msra.mxu0 0
        %1557 = vmatprep.subr.bf16.mxu0 0
        %1558 = vmatpush1.bf16.msra.mxu0 0
        %1559 = vmatprep.subr.bf16.mxu0 0
        %1560 = vmatpush1.bf16.msra.mxu0 0
        %1561 = vmatprep.subr.bf16.mxu0 0
        %1562 = vmatpush1.bf16.msra.mxu0 0
        %1563 = vmatprep.subr.bf16.mxu0 0
        %1564 = vmatpush1.bf16.msra.mxu0 0
        %1565 = vmatprep.subr.bf16.mxu0 0
        %1566 = vmatpush1.bf16.msra.mxu0 0
        %1567 = vmatprep.subr.bf16.mxu0 0
        %1568 = vmatpush1.bf16.msra.mxu0 0
        %1569 = vmatprep.subr.bf16.mxu0 0
        %1570 = vmatpush1.bf16.msra.mxu0 0
        %1571 = vmatprep.subr.bf16.mxu0 0
        %1572 = vmatpush1.bf16.msra.mxu0 0
        %1573 = vmatprep.subr.bf16.mxu0 0
        %1574 = vmatpush1.bf16.msra.mxu0 0
        %1575 = vmatprep.subr.bf16.mxu0 0
        %1576 = vmatpush1.bf16.msra.mxu0 0
        %1577 = vmatprep.mubr.bf16.mxu0 0
        %1578 = vmatmul.mubr.bf16.gmra.mrb[0].mxu0 %v1543
        %v1579 = vpop.f32.mrb[0].mxu0
        %v1580 = vadd.f32 %v1528, %v1579
        %v1581 = vpop.f32.mrb[0].mxu0
        %v1582 = vpop.f32.mrb[0].mxu0
        %v1583 = vpop.f32.mrb[0].mxu0
        %1584 = vdwg.mxu0
        %1586 = vrot.lane.b32.xlu0 %v1580, 64
        %v1587 = vpop.permute.xlu0 %1586
        %v1589 = vadd.f32 %v1150, %v1587
        %v1590 = vmul.f32 %v1589, %v951
        %1592 = vrot.lane.b32.xlu0 %v1590, 64
        %v1593 = vpop.permute.xlu0 %1592
        %v1595 = vsel %vm534, %v1593, 0.0
        %1596 = vadd.xlane.f32.xlu0 %v1595
        %v1597 = vpop.xlane.xlu0 %1596
        %v1598 = vmul.f32 %v1597, %v957
        %v1599 = vsub.f32 %v1590, %v1598
        %v1600 = vmul.f32 %v1599, %v1599
        %1602 = vrot.lane.b32.xlu0 %v1600, 64
        %v1603 = vpop.permute.xlu0 %1602
        %v1605 = vsel %vm534, %v1603, 0.0
        %1606 = vadd.xlane.f32.xlu0 %v1605
        %v1607 = vpop.xlane.xlu0 %1606
        %v1608 = vmul.f32 %v1607, %v957
        %v1609 = vlaneseq
        %v1610 = vshrl.u32 %v1609, 7
        %v1611 = vsub.s32 0, %v1610
        %v1612 = vrot.slane %v1151, %v1611
        %1614 = vrot.lane.b32.xlu0 %v1599, 64
        %v1615 = vpop.permute.xlu0 %1614
        %v1617 = vmul.f32 %v1612, %v1615
        %v1618 = vadd.f32 %v1608, 1e-05
        %v1619 = vrsqrt.pop %v1618
        %v1620 = vmul.f32 %v1617, %v1619
        %1622 = vrot.lane.b32.xlu0 %v1612, 96
        %v1623 = vpop.permute.xlu0 %1622
        %v1625 = vadd.f32 %v1620, %v1623
        %v1626 = vpack.c.bf16 %v1625, %v1625
        %s1627 = scalar_lea.vmem %s7, 16
        %v1628 = vld [vmem:[%s1627] sm:$0xf]
        %v1629 = vld [vmem:[%s1627 + $0x4] sm:$0xf]
        %v1630 = vld [vmem:[%s1627 + $0x8] sm:$0xf]
        %v1631 = vld [vmem:[%s1627 + $0xc] sm:$0xf]
        %s1632 = scalar_lea.vmem [#allocation8], 1
        %v1633 = vld [vmem:[%s1632] sm:$0x1]
        %v1635 = vlaneseq
        %v1636 = vshrl.u32 %v1635, 7
        %v1637 = vsub.s32 0, %v1636
        %v1638 = vrot.slane %v1633, %v1637
        %v1644 = vunpack.c.l.b16 %v1628
        %v1645 = vunpack.c.l.b16 %v1629
        %v1646 = vunpack.c.l.b16 %v1630
        %v1647 = vunpack.c.l.b16 %v1631
        %v1648 = vpack.c.b16 %v1645, %v1644
        %v1649 = vpack.c.b16 %v1647, %v1646
        %v1653 = vsel %vm534, %v1626, 0
        %1655 = vmatprep.subr.bf16.mxu0 0
        %1656 = vmatpush1.bf16.msra.mxu0 %v1648
        %1657 = vmatprep.subr.bf16.mxu0 0
        %1658 = vmatpush1.bf16.msra.mxu0 %v1649
        %1659 = vmatprep.subr.bf16.mxu0 0
        %1660 = vmatpush1.bf16.msra.mxu0 0
        %1661 = vmatprep.subr.bf16.mxu0 0
        %1662 = vmatpush1.bf16.msra.mxu0 0
        %1663 = vmatprep.subr.bf16.mxu0 0
        %1664 = vmatpush1.bf16.msra.mxu0 0
        %1665 = vmatprep.subr.bf16.mxu0 0
        %1666 = vmatpush1.bf16.msra.mxu0 0
        %1667 = vmatprep.subr.bf16.mxu0 0
        %1668 = vmatpush1.bf16.msra.mxu0 0
        %1669 = vmatprep.subr.bf16.mxu0 0
        %1670 = vmatpush1.bf16.msra.mxu0 0
        %1671 = vmatprep.subr.bf16.mxu0 0
        %1672 = vmatpush1.bf16.msra.mxu0 0
        %1673 = vmatprep.subr.bf16.mxu0 0
        %1674 = vmatpush1.bf16.msra.mxu0 0
        %1675 = vmatprep.subr.bf16.mxu0 0
        %1676 = vmatpush1.bf16.msra.mxu0 0
        %1677 = vmatprep.subr.bf16.mxu0 0
        %1678 = vmatpush1.bf16.msra.mxu0 0
        %1679 = vmatprep.subr.bf16.mxu0 0
        %1680 = vmatpush1.bf16.msra.mxu0 0
        %1681 = vmatprep.subr.bf16.mxu0 0
        %1682 = vmatpush1.bf16.msra.mxu0 0
        %1683 = vmatprep.subr.bf16.mxu0 0
        %1684 = vmatpush1.bf16.msra.mxu0 0
        %1685 = vmatprep.subr.bf16.mxu0 0
        %1686 = vmatpush1.bf16.msra.mxu0 0
        %1687 = vmatprep.mubr.bf16.mxu0 0
        %1688 = vmatmul.mubr.bf16.gmra.mrb[0].mxu0 %v1653
        %v1689 = vpop.f32.mrb[0].mxu0
        %v1690 = vadd.f32 %v1638, %v1689
        %v1691 = vpop.f32.mrb[0].mxu0
        %v1692 = vpop.f32.mrb[0].mxu0
        %v1693 = vpop.f32.mrb[0].mxu0
        %1694 = vdwg.mxu0
        %v1695 = vmax.f32 %v1690, 0.0
        %v1696 = vpack.c.bf16 %v1695, %v1695
        %s1697 = scalar_lea.vmem %s9, 32
        %v1698 = vld [vmem:[%s1697] sm:$0xf]
        %v1699 = vld [vmem:[%s1697 + $0x4] sm:$0xf]
        %v1700 = vld [vmem:[%s1697 + $0x8] sm:$0xf]
        %v1701 = vld [vmem:[%s1697 + $0xc] sm:$0xf]
        %v1702 = vld [vmem:[%s1697 + $0x10] sm:$0xf]
        %v1703 = vld [vmem:[%s1697 + $0x14] sm:$0xf]
        %v1704 = vld [vmem:[%s1697 + $0x18] sm:$0xf]
        %v1705 = vld [vmem:[%s1697 + $0x1c] sm:$0xf]
        %s1706 = scalar_lea.vmem [#allocation9], 1
        %v1707 = vld [vmem:[%s1706] sm:$0x1]
        %v1709 = vlaneseq
        %v1710 = vshrl.u32 %v1709, 7
        %v1711 = vsub.s32 0, %v1710
        %v1712 = vrot.slane %v1707, %v1711
        %v1722 = vunpack.c.l.b16 %v1698
        %v1723 = vunpack.c.l.b16 %v1699
        %v1724 = vunpack.c.l.b16 %v1700
        %v1725 = vunpack.c.l.b16 %v1701
        %v1726 = vunpack.c.l.b16 %v1702
        %v1727 = vunpack.c.l.b16 %v1703
        %v1728 = vunpack.c.l.b16 %v1704
        %v1729 = vunpack.c.l.b16 %v1705
        %v1730 = vpack.c.b16 %v1723, %v1722
        %v1731 = vpack.c.b16 %v1725, %v1724
        %v1732 = vpack.c.b16 %v1727, %v1726
        %v1733 = vpack.c.b16 %v1729, %v1728
        %v1739 = vsel %vm1086, %v1696, 0
        %1741 = vmatprep.subr.bf16.mxu0 0
        %1742 = vmatpush1.bf16.msra.mxu0 %v1730
        %1743 = vmatprep.subr.bf16.mxu0 0
        %1744 = vmatpush1.bf16.msra.mxu0 %v1731
        %1745 = vmatprep.subr.bf16.mxu0 0
        %1746 = vmatpush1.bf16.msra.mxu0 %v1732
        %1747 = vmatprep.subr.bf16.mxu0 0
        %1748 = vmatpush1.bf16.msra.mxu0 %v1733
        %1749 = vmatprep.subr.bf16.mxu0 0
        %1750 = vmatpush1.bf16.msra.mxu0 0
        %1751 = vmatprep.subr.bf16.mxu0 0
        %1752 = vmatpush1.bf16.msra.mxu0 0
        %1753 = vmatprep.subr.bf16.mxu0 0
        %1754 = vmatpush1.bf16.msra.mxu0 0
        %1755 = vmatprep.subr.bf16.mxu0 0
        %1756 = vmatpush1.bf16.msra.mxu0 0
        %1757 = vmatprep.subr.bf16.mxu0 0
        %1758 = vmatpush1.bf16.msra.mxu0 0
        %1759 = vmatprep.subr.bf16.mxu0 0
        %1760 = vmatpush1.bf16.msra.mxu0 0
        %1761 = vmatprep.subr.bf16.mxu0 0
        %1762 = vmatpush1.bf16.msra.mxu0 0
        %1763 = vmatprep.subr.bf16.mxu0 0
        %1764 = vmatpush1.bf16.msra.mxu0 0
        %1765 = vmatprep.subr.bf16.mxu0 0
        %1766 = vmatpush1.bf16.msra.mxu0 0
        %1767 = vmatprep.subr.bf16.mxu0 0
        %1768 = vmatpush1.bf16.msra.mxu0 0
        %1769 = vmatprep.subr.bf16.mxu0 0
        %1770 = vmatpush1.bf16.msra.mxu0 0
        %1771 = vmatprep.subr.bf16.mxu0 0
        %1772 = vmatpush1.bf16.msra.mxu0 0
        %1773 = vmatprep.mubr.bf16.mxu0 0
        %1774 = vmatmul.mubr.bf16.gmra.mrb[0].mxu0 %v1739
        %v1775 = vpop.f32.mrb[0].mxu0
        %v1776 = vadd.f32 %v1712, %v1775
        %v1777 = vpop.f32.mrb[0].mxu0
        %v1778 = vpop.f32.mrb[0].mxu0
        %v1779 = vpop.f32.mrb[0].mxu0
        %1780 = vdwg.mxu0
        %v1781 = vadd.f32 %v1625, %v1776
        %v1782 = vmul.f32 %v1781, %v951
        %v1783 = vsel %vm534, %v1782, 0.0
        %1784 = vadd.xlane.f32.xlu0 %v1783
        %v1785 = vpop.xlane.xlu0 %1784
        %v1786 = vmul.f32 %v1785, %v957
        %v1787 = vsub.f32 %v1782, %v1786
        %v1788 = vmul.f32 %v1787, %v1787
        %v1789 = vsel %vm534, %v1788, 0.0
        %1790 = vadd.xlane.f32.xlu0 %v1789
        %v1791 = vpop.xlane.xlu0 %1790
        %v1792 = vmul.f32 %v1791, %v957
        %1794 = vrot.lane.b32.xlu0 %v1787, 64
        %v1795 = vpop.permute.xlu0 %1794
        %v1797 = vmul.f32 %v1612, %v1795
        %v1798 = vadd.f32 %v1792, 1e-05
        %v1799 = vrsqrt.pop %v1798
        %v1800 = vmul.f32 %v1797, %v1799
        %v1801 = vadd.f32 %v1800, %v1623
        %1803 = vrot.lane.b32.xlu0 %v1801, 64
        %v1804 = vpop.permute.xlu0 %1803
        %1806 = vst.msk [vmem:[%s460] sm:$0xff] %vm534, %v1804
        %s1807 = sand.u32 %s282, 1
        %s1808 = scalar_lea.sflag [#allocation5], %s1807
        %s1809 = sand.u32 %s282, 1
        %s1810 = smul.addr %s1809, 8
        %s1811 = scalar_lea.vmem [#allocation11], %s1810
        // Predicated region
        $region81: #{pitch_predictor_forward.1} parent=63 // pred_check
          %p1812 = pneg %p292
        $region82: #{pitch_predictor_forward.1} parent=63 // pred_check_branch
          %1814 = sbr.rel (%p1812) target = $region84
        $region83: #{pitch_predictor_forward.1} parent=63 // pred_region
          %s1816 = ssub.s32 128, 128
          %1817 = vsyncadd %s1808, %s1816
          %s1818 = smul.addr %s28, 128
          %s1819 = scalar_lea.hbm %s11, %s1818
          %s1821 = sshll.u32 %s1811, 4
          %s1822 = int_to_ptr.vmem [resolvable:$true] %s1821
          %1824 = dma.vmem_to_hbm [thread:$0]  %s1822, 128, %s1819, %s1808
        $region84: #{pitch_predictor_forward.1} parent=63 // pred_fallthru
          _
      $region64: #{pitch_predictor_forward.1} parent=5 // pred_fallthru
        _
      %p1825 = scmp.le.s32.totalorder 2, %s23
      // Predicated region
      $region85: #{pitch_predictor_forward.1} parent=5 // pred_check
        %p1826 = pneg %p1825
      $region86: #{pitch_predictor_forward.1} parent=5 // pred_check_branch
        %1828 = sbr.rel (%p1826) target = $region88
      $region87: #{pitch_predictor_forward.1} parent=5 // pred_region
        %s1829 = ssub.s32 %s23, 2
        // Predicated region
        $region89: #{pitch_predictor_forward.1} parent=87 // pred_check
          %p1830 = pneg %p298
        $region90: #{pitch_predictor_forward.1} parent=87 // pred_check_branch
          %1832 = sbr.rel (%p1830) target = $region92
        $region91: #{pitch_predictor_forward.1} parent=87 // pred_region
          %s1833 = sand.u32 %s283, 1
          %s1834 = scalar_lea.sflag [#allocation5], %s1833
          %s1835 = sand.u32 %s283, 1
          %s1836 = smul.addr %s1835, 8
          %s1837 = scalar_lea.vmem [#allocation11], %s1836
          %1838 = dma.done %s1834, 128
        $region92: #{pitch_predictor_forward.1} parent=87 // pred_fallthru
          _
      $region88: #{pitch_predictor_forward.1} parent=5 // pred_fallthru
        _
    $region6: #{pitch_predictor_forward.1} parent=1 // loop_footer
      %s27 = sadd.s32 1, %s23
    $region7: #{pitch_predictor_forward.1} parent=1 // loop_footer_branch
      %22 = sbr.rel target = $region3
    $region8: #{pitch_predictor_forward.1} parent=1 // loop_exit
      _
    %1839 = vsyncpa [#allocation4], 1
    %s1840 = scalar_lea.sflag [#allocation4], 1
    %1841 = vsyncpa %s1840, 1
    %1842 = vsyncpa [#allocation7], 1
    %1843 = vsyncpa [#allocation10], 1
    %1844 = vsyncpa [#allocation5], 1
    %s1845 = scalar_lea.sflag [#allocation5], 1
    %1846 = vsyncpa %s1845, 1

</llo_original>
